<compile_context>
chip_gen: v5e
topology: v5e:2x2
jax: 0.10.0
libtpu: 0.0.40
codegen_flags: <defaults>
</compile_context>

<pallas_src>
import functools

import jax
import jax.numpy as jnp
from jax import lax
from jax.experimental import pallas as pl
from jax.experimental.pallas import tpu as pltpu


HIDDEN = 600       # module hidden width
HIDDEN_PAD = 640   # padded to 5*128 lanes; lane HIDDEN carries the folded output bias
BIG_BIAS = 20.0    # tanh(20.0) == 1.0 in float32 -> bias-fold lane saturates to 1 for free


def vaecf_kernel(iid_ref,                                    # scalar prefetch (SMEM)
                 uvec_ref, wq0_ref, bq0_ref, wq1_ref, bq1_ref,
                 wp0_ref, bp0_ref, wp1_hbm, eps_ref,         # inputs
                 out_ref,                                    # output
                 wbuf, sem,                                  # scratch
                 *, tb):
    base = pl.program_id(0) * tb
    L = eps_ref.shape[1]

    # ---- start the per-row wp1 gather DMAs immediately; they complete under the MLP ----
    @pl.loop(0, tb)
    def _(r):
        pltpu.make_async_copy(wp1_hbm.at[iid_ref[base + r]], wbuf.at[r], sem.at[0]).start()

    # ---- encode: F.normalize (L2, dim=1, eps=1e-12); dropout = identity (eval) ----
    uvec = uvec_ref[...]                                                 # (tb, L) f32, pipelined
    ssq = jnp.sum(uvec * uvec, axis=1, keepdims=True)
    h = uvec * lax.rsqrt(jnp.maximum(ssq, 1e-24))                        # == x / max(||x||, 1e-12)

    # q_layers: Linear(L -> 600) -> Tanh -> Linear(600 -> 2L)   (bf16 MXU, f32 accum)
    h = jnp.tanh(jnp.dot(h.astype(jnp.bfloat16), wq0_ref[...],
                         preferred_element_type=jnp.float32) + bq0_ref[...])    # (tb, Hp)
    h2 = jnp.dot(h.astype(jnp.bfloat16), wq1_ref[...],
                 preferred_element_type=jnp.float32) + bq1_ref[...]             # (tb, 2L)

    mu = h2[:, :L]
    logvar = h2[:, L:]
    z = eps_ref[...] * jnp.exp(0.5 * logvar) + mu                        # reparameterize

    # p_layers first linear + tanh.  bp0 lane HIDDEN holds BIG_BIAS (wp0 padded cols are 0),
    # so d[:, HIDDEN] == 1.0 exactly and the folded output bias at wp1_aug[:, HIDDEN] is
    # picked up by the lane reduce below with no iota/where work.
    d = jnp.tanh(jnp.dot(z.astype(jnp.bfloat16), wp0_ref[...],
                         preferred_element_type=jnp.float32) + bp0_ref[...])    # (tb, Hp)

    # ---- single aggregated wait: DMA semaphores count bytes, so one descriptor sized for
    #      the full (tb, Hp) buffer drains all tb row-copy completions on sem[0] ----
    pltpu.make_async_copy(wp1_hbm.at[pl.ds(0, tb)], wbuf, sem.at[0]).wait()

    # scores.gather(1, item_indices): per-row dot against gathered wp1 column (+ folded bias)
    picked = jnp.sum(d * wbuf[...], axis=1, keepdims=True)               # (tb, 1)
    out_ref[...] = jax.nn.sigmoid(picked)


def vaecf_forward(user_indices, item_indices, params, eps, *, tb=256):
    """Forward pass. `params` is the pack_params() dict; eps is the reparameterization noise."""
    B = user_indices.shape[0]
    L = eps.shape[1]
    assert tb % 8 == 0, "tb must be a multiple of 8 (sublane tiling)"
    n_tiles = (B + tb - 1) // tb
    if n_tiles > 1 and n_tiles % 2:       # even tile count -> both v7x TensorCores stay busy
        n_tiles += 1
    B_pad = n_tiles * tb
    pad = B_pad - B

    wq0, bq0 = params["wq0"], params["bq0"]
    wq1, bq1 = params["wq1"], params["bq1"]
    wp0, bp0 = params["wp0"], params["bp0"]
    wp1_aug = params["wp1_aug"]
    emb = params["emb"]
    Hp = wq0.shape[1]
    # Aggregated-wait descriptor slices wp1_aug[0:tb]; needs num_items >= tb.
    assert wp1_aug.shape[0] >= tb, "tb must not exceed num_items"

    # Padding rows reuse index 0 (a valid row); their outputs are sliced off below.
    uid = jnp.pad(user_indices.astype(jnp.int32), (0, pad))
    iid = jnp.pad(item_indices.astype(jnp.int32), (0, pad))
    eps_p = jnp.pad(eps.astype(jnp.float32), ((0, pad), (0, 0)))

    # User-embedding gather done by XLA in the wrapper; the gathered (B_pad, L) activations
    # are fed through a normal BlockSpec so Pallas pipelines them (no exposed DMA latency).
    uvec = jnp.take(emb, uid, axis=0)

    const2d = lambda b, i: (0, 0)   # weights stay VMEM-resident across grid steps
    grid_spec = pltpu.PrefetchScalarGridSpec(
        num_scalar_prefetch=1,
        grid=(n_tiles,),
        in_specs=[
            pl.BlockSpec((tb, L), lambda b, i: (b, 0)),          # gathered user vectors
            pl.BlockSpec(wq0.shape, const2d),
            pl.BlockSpec(bq0.shape, const2d),
            pl.BlockSpec(wq1.shape, const2d),
            pl.BlockSpec(bq1.shape, const2d),
            pl.BlockSpec(wp0.shape, const2d),
            pl.BlockSpec(bp0.shape, const2d),
            pl.BlockSpec(memory_space=pl.ANY),                   # wp1_aug: HBM, in-kernel gather
            pl.BlockSpec((tb, L), lambda b, i: (b, 0)),          # eps
        ],
        out_specs=pl.BlockSpec((tb, 1), lambda b, i: (b, 0)),
        scratch_shapes=[
            pltpu.VMEM((tb, Hp), jnp.float32),   # gathered wp1 rows (+folded bias)
            pltpu.SemaphoreType.DMA((1,)),
        ],
    )

    flops = 2 * B_pad * (L * Hp + Hp * 2 * L + L * Hp + Hp)
    transcendentals = B_pad * (2 * Hp + L + 1)
    weight_bytes = sum(int(a.size) * a.dtype.itemsize
                       for a in (wq0, bq0, wq1, bq1, wp0, bp0))
    bytes_accessed = (weight_bytes
                      + B_pad * L * 4            # gathered user vectors (streamed)
                      + B_pad * Hp * 4           # gathered wp1 rows
                      + B_pad * L * 4            # eps
                      + B_pad * 4                # out
                      + B_pad * 4)               # item indices

    out = pl.pallas_call(
        functools.partial(vaecf_kernel, tb=tb),
        out_shape=jax.ShapeDtypeStruct((B_pad, 1), jnp.float32),
        grid_spec=grid_spec,
        compiler_params=pltpu.CompilerParams(
            dimension_semantics=("parallel",),        # megacore sharding on v7x
            vmem_limit_bytes=32 * 1024 * 1024,        # safe on all gens incl. v7x's 64 MiB
        ),
        cost_estimate=pl.CostEstimate(flops=flops,
                                      transcendentals=transcendentals,
                                      bytes_accessed=bytes_accessed),
    )(iid, uvec, wq0, bq0, wq1, bq1, wp0, bp0, wp1_aug, eps_p)
    return out[:B, 0]


def init_params(key, num_users, num_items, latent_size, hidden=HIDDEN):
    """Raw f32 parameters mirroring the module's init_weights()."""
    def xavier(k, fan_in, fan_out):
        std = (2.0 / (fan_in + fan_out)) ** 0.5
        return jax.random.normal(k, (fan_in, fan_out), jnp.float32) * std  # stored (in, out)

    def bias(k, n):
        return jax.random.normal(k, (n,), jnp.float32) * 0.001

    ks = jax.random.split(key, 9)
    return {
        # q_layers: [num_items, 600, 2*latent]  (num_items == latent here, see header note)
        "wq0": xavier(ks[0], num_items, hidden),
        "bq0": bias(ks[1], hidden),
        "wq1": xavier(ks[2], hidden, 2 * latent_size),
        "bq1": bias(ks[3], 2 * latent_size),
        # p_layers: [latent, 600, num_items]
        "wp0": xavier(ks[4], latent_size, hidden),
        "bp0": bias(ks[5], hidden),
        "wp1": xavier(ks[6], hidden, num_items),
        "bp1": bias(ks[7], num_items),
        # nn.Embedding default init: N(0, 1)
        "emb": jax.random.normal(ks[8], (num_users, latent_size), jnp.float32),
    }


def pack_params(p, hidden=HIDDEN, hidden_pad=HIDDEN_PAD):
    """Kernel-ready params: hidden padded 600->640, bf16 matmul operands, decoder output
    weights re-packed item-major with bp1 folded into lane `hidden`, and bp0's padded lane
    `hidden` set to BIG_BIAS so tanh saturates that lane of d to exactly 1.0 (bias fold)."""
    pad_n = hidden_pad - hidden
    num_items = p["wp1"].shape[1]
    wp1_aug = jnp.zeros((num_items, hidden_pad), jnp.float32)
    wp1_aug = wp1_aug.at[:, :hidden].set(p["wp1"].T)
    wp1_aug = wp1_aug.at[:, hidden].set(p["bp1"])
    bp0_pad = (jnp.zeros((hidden_pad,), jnp.float32)
               .at[:hidden].set(p["bp0"])
               .at[hidden].set(BIG_BIAS))
    return {
        "wq0": jnp.pad(p["wq0"], ((0, 0), (0, pad_n))).astype(jnp.bfloat16),
        "bq0": jnp.pad(p["bq0"], (0, pad_n)).reshape(1, hidden_pad),
        "wq1": jnp.pad(p["wq1"], ((0, pad_n), (0, 0))).astype(jnp.bfloat16),
        "bq1": p["bq1"].reshape(1, -1),
        "wp0": jnp.pad(p["wp0"], ((0, 0), (0, pad_n))).astype(jnp.bfloat16),
        "bp0": bp0_pad.reshape(1, hidden_pad),
        "wp1_aug": wp1_aug,
        "emb": p["emb"].astype(jnp.float32),
    }


def vaecf_reference(user_indices, item_indices, p, eps):
    """Pure-JAX f32 reference for correctness check."""
    uvec = p["emb"][user_indices]
    nrm = jnp.maximum(jnp.sqrt(jnp.sum(uvec * uvec, axis=1, keepdims=True)), 1e-12)
    h = uvec / nrm
    h = jnp.tanh(h @ p["wq0"] + p["bq0"])
    h = h @ p["wq1"] + p["bq1"]
    L = eps.shape[1]
    mu, logvar = h[:, :L], h[:, L:]
    z = eps * jnp.exp(0.5 * logvar) + mu
    d = jnp.tanh(z @ p["wp0"] + p["bp0"])
    scores = d @ p["wp1"] + p["bp1"]
    picked = jnp.take_along_axis(scores, item_indices[:, None], axis=1)[:, 0]
    return jax.nn.sigmoid(picked)


if __name__ == "__main__":
    B = 24
    TB = 8            # small tile for the toy test; use the default 256 for real batches
    NUM_USERS = 16
    NUM_ITEMS = 128
    LATENT = 128      # module's forward is only shape-consistent when num_items == latent
    key = jax.random.PRNGKey(0)
    k_par, k_u, k_i, k_eps = jax.random.split(key, 4)

    raw = init_params(k_par, NUM_USERS, NUM_ITEMS, LATENT)
    packed = pack_params(raw)
    user_indices = jax.random.randint(k_u, (B,), 0, NUM_USERS, dtype=jnp.int32)
    item_indices = jax.random.randint(k_i, (B,), 0, NUM_ITEMS, dtype=jnp.int32)
    eps = jax.random.normal(k_eps, (B, LATENT), jnp.float32)   # reparameterization noise

    pred = vaecf_forward(user_indices, item_indices, packed, eps, tb=TB)
    pred = jax.block_until_ready(pred)

    ref = jax.block_until_ready(vaecf_reference(user_indices, item_indices, raw, eps))
    assert pred.shape == (B,)
    assert jnp.allclose(pred, ref, atol=2e-2, rtol=2e-2), (pred, ref)

    print("KERNEL_OK")
</pallas_src>

<mosaic_0001>
module attributes {stable_mosaic.version = 11 : i64} {
  func.func @vaecf_kernel(%arg0: i32, %arg1: memref<32xi32, #tpu.memory_space<smem>>, %arg2: memref<8x128xf32, #tpu.memory_space<vmem>>, %arg3: memref<128x640xbf16, #tpu.memory_space<vmem>>, %arg4: memref<1x640xf32, #tpu.memory_space<vmem>>, %arg5: memref<640x256xbf16, #tpu.memory_space<vmem>>, %arg6: memref<1x256xf32, #tpu.memory_space<vmem>>, %arg7: memref<128x640xbf16, #tpu.memory_space<vmem>>, %arg8: memref<1x640xf32, #tpu.memory_space<vmem>>, %arg9: memref<128x640xf32, #tpu.memory_space<any>>, %arg10: memref<8x128xf32, #tpu.memory_space<vmem>>, %arg11: memref<8x1xf32, #tpu.memory_space<vmem>>, %arg12: memref<8x640xf32, #tpu.memory_space<vmem>>, %arg13: memref<1x!tpu.dma_semaphore, #tpu.memory_space<semaphore_mem>>) attributes {dimension_semantics = [#tpu.dimension_semantics<parallel>], iteration_bounds = array<i64: 4>, scalar_prefetch = 1 : i64, scratch_operands = 2 : i64, tpu.core_type = #tpu.core_type<tc>, window_params = [{transform_indices = @transform_0, window_bounds = array<i64: 8, 128>}, {pipeline_mode = #tpu.pipeline_mode<synchronous>, transform_indices = @transform_1, window_bounds = array<i64: 128, 640>}, {pipeline_mode = #tpu.pipeline_mode<synchronous>, transform_indices = @transform_2, window_bounds = array<i64: 1, 640>}, {pipeline_mode = #tpu.pipeline_mode<synchronous>, transform_indices = @transform_3, window_bounds = array<i64: 640, 256>}, {pipeline_mode = #tpu.pipeline_mode<synchronous>, transform_indices = @transform_4, window_bounds = array<i64: 1, 256>}, {pipeline_mode = #tpu.pipeline_mode<synchronous>, transform_indices = @transform_5, window_bounds = array<i64: 128, 640>}, {pipeline_mode = #tpu.pipeline_mode<synchronous>, transform_indices = @transform_6, window_bounds = array<i64: 1, 640>}, {}, {transform_indices = @transform_8, window_bounds = array<i64: 8, 128>}, {transform_indices = @transform_9, window_bounds = array<i64: 8, 1>}]} {
    %c8_i32 = arith.constant 8 : i32
    %0 = arith.muli %arg0, %c8_i32 : i32
    %c0_i32 = arith.constant 0 : i32
    %c8_i32_0 = arith.constant 8 : i32
    %1 = arith.addi %c0_i32, %c8_i32_0 : i32
    %c1_i32 = arith.constant 1 : i32
    scf.for %arg14 = %c0_i32 to %1 step %c1_i32  : i32 {
      %c1_i32_31 = arith.constant 1 : i32
      %52 = arith.muli %arg14, %c1_i32_31 : i32
      %c0_i32_32 = arith.constant 0 : i32
      %53 = arith.addi %c0_i32_32, %52 : i32
      %54 = arith.addi %0, %53 : i32
      %55 = arith.index_cast %54 : i32 to index
      %56 = memref.load %arg1[%55] : memref<32xi32, #tpu.memory_space<smem>>
      %c0_i32_33 = arith.constant 0 : i32
      %c0_i32_34 = arith.constant 0 : i32
      %57 = tpu.memref_slice %arg9[%56, %c0_i32_34] : memref<128x640xf32, #tpu.memory_space<any>> -> memref<1x640xf32, #tpu.memory_space<any>>
      %58 = tpu.memref_squeeze %57 : memref<1x640xf32, #tpu.memory_space<any>> -> memref<640xf32, #tpu.memory_space<any>>
      %c0_i32_35 = arith.constant 0 : i32
      %59 = tpu.memref_slice %arg12[%53, %c0_i32_35] : memref<8x640xf32, #tpu.memory_space<vmem>> -> memref<1x640xf32, #tpu.memory_space<vmem>>
      %60 = tpu.memref_squeeze %59 : memref<1x640xf32, #tpu.memory_space<vmem>> -> memref<640xf32, #tpu.memory_space<vmem>>
      %61 = tpu.memref_slice %arg13[%c0_i32_33] : memref<1x!tpu.dma_semaphore, #tpu.memory_space<semaphore_mem>> -> memref<1x!tpu.dma_semaphore, #tpu.memory_space<semaphore_mem>>
      %62 = tpu.memref_squeeze %61 : memref<1x!tpu.dma_semaphore, #tpu.memory_space<semaphore_mem>> -> memref<!tpu.dma_semaphore, #tpu.memory_space<semaphore_mem>>
      tpu.enqueue_dma source(%58 : memref<640xf32, #tpu.memory_space<any>>) target(%60 : memref<640xf32, #tpu.memory_space<vmem>>) target_semaphore(%62 : memref<!tpu.dma_semaphore, #tpu.memory_space<semaphore_mem>>)
    }
    %c8_i32_1 = arith.constant 8 : i32
    %c0 = arith.constant 0 : index
    %c0_2 = arith.constant 0 : index
    %2 = vector.load %arg2[%c0, %c0_2] : memref<8x128xf32, #tpu.memory_space<vmem>>, vector<8x128xf32>
    %3 = arith.mulf %2, %2 : vector<8x128xf32>
    %cst = arith.constant dense<0.000000e+00> : vector<8xf32>
    %4 = vector.multi_reduction <add>, %3, %cst [1] : vector<8x128xf32> to vector<8xf32>
    %5 = vector.shape_cast %4 : vector<8xf32> to vector<8x1xf32>
    %cst_3 = arith.constant 1.000000e-24 : f32
    %6 = vector.broadcast %cst_3 : f32 to vector<8x1xf32>
    %7 = arith.maximumf %5, %6 : vector<8x1xf32>
    %8 = math.rsqrt %7 : vector<8x1xf32>
    %9 = vector.broadcast %8 : vector<8x1xf32> to vector<8x128xf32>
    %10 = arith.mulf %2, %9 : vector<8x128xf32>
    %11 = arith.truncf %10 : vector<8x128xf32> to vector<8x128xbf16>
    %c0_4 = arith.constant 0 : index
    %c0_5 = arith.constant 0 : index
    %12 = vector.load %arg3[%c0_4, %c0_5] : memref<128x640xbf16, #tpu.memory_space<vmem>>, vector<128x640xbf16>
    %cst_6 = arith.constant dense<0.000000e+00> : vector<8x640xf32>
    %13 = tpu.matmul %11, %12, %cst_6 {dimension_numbers = #tpu.dot_dimension_numbers<[1], [0], [0], [1], [0, 0, 1, 1], [], []>} : vector<8x128xbf16>, vector<128x640xbf16>, vector<8x640xf32> -> vector<8x640xf32>
    %c0_7 = arith.constant 0 : index
    %c0_8 = arith.constant 0 : index
    %14 = vector.load %arg4[%c0_7, %c0_8] : memref<1x640xf32, #tpu.memory_space<vmem>>, vector<1x640xf32>
    %15 = vector.broadcast %14 : vector<1x640xf32> to vector<8x640xf32>
    %16 = arith.addf %13, %15 : vector<8x640xf32>
    %17 = math.tanh %16 : vector<8x640xf32>
    %18 = arith.truncf %17 : vector<8x640xf32> to vector<8x640xbf16>
    %c0_9 = arith.constant 0 : index
    %c0_10 = arith.constant 0 : index
    %19 = vector.load %arg5[%c0_9, %c0_10] : memref<640x256xbf16, #tpu.memory_space<vmem>>, vector<640x256xbf16>
    %cst_11 = arith.constant dense<0.000000e+00> : vector<8x256xf32>
    %20 = tpu.matmul %18, %19, %cst_11 {dimension_numbers = #tpu.dot_dimension_numbers<[1], [0], [0], [1], [0, 0, 1, 1], [], []>} : vector<8x640xbf16>, vector<640x256xbf16>, vector<8x256xf32> -> vector<8x256xf32>
    %c0_12 = arith.constant 0 : index
    %c0_13 = arith.constant 0 : index
    %21 = vector.load %arg6[%c0_12, %c0_13] : memref<1x256xf32, #tpu.memory_space<vmem>>, vector<1x256xf32>
    %22 = vector.broadcast %21 : vector<1x256xf32> to vector<8x256xf32>
    %23 = arith.addf %20, %22 : vector<8x256xf32>
    %24 = vector.extract_strided_slice %23 {offsets = [0, 0], sizes = [8, 128], strides = [1, 1]} : vector<8x256xf32> to vector<8x128xf32>
    %25 = vector.extract_strided_slice %23 {offsets = [0, 128], sizes = [8, 128], strides = [1, 1]} : vector<8x256xf32> to vector<8x128xf32>
    %c0_14 = arith.constant 0 : index
    %c0_15 = arith.constant 0 : index
    %26 = vector.load %arg10[%c0_14, %c0_15] : memref<8x128xf32, #tpu.memory_space<vmem>>, vector<8x128xf32>
    %cst_16 = arith.constant 5.000000e-01 : f32
    %27 = vector.broadcast %cst_16 : f32 to vector<8x128xf32>
    %28 = arith.mulf %27, %25 : vector<8x128xf32>
    %29 = math.exp %28 : vector<8x128xf32>
    %30 = arith.mulf %26, %29 : vector<8x128xf32>
    %31 = arith.addf %30, %24 : vector<8x128xf32>
    %32 = arith.truncf %31 : vector<8x128xf32> to vector<8x128xbf16>
    %c0_17 = arith.constant 0 : index
    %c0_18 = arith.constant 0 : index
    %33 = vector.load %arg7[%c0_17, %c0_18] : memref<128x640xbf16, #tpu.memory_space<vmem>>, vector<128x640xbf16>
    %cst_19 = arith.constant dense<0.000000e+00> : vector<8x640xf32>
    %34 = tpu.matmul %32, %33, %cst_19 {dimension_numbers = #tpu.dot_dimension_numbers<[1], [0], [0], [1], [0, 0, 1, 1], [], []>} : vector<8x128xbf16>, vector<128x640xbf16>, vector<8x640xf32> -> vector<8x640xf32>
    %c0_20 = arith.constant 0 : index
    %c0_21 = arith.constant 0 : index
    %35 = vector.load %arg8[%c0_20, %c0_21] : memref<1x640xf32, #tpu.memory_space<vmem>>, vector<1x640xf32>
    %36 = vector.broadcast %35 : vector<1x640xf32> to vector<8x640xf32>
    %37 = arith.addf %34, %36 : vector<8x640xf32>
    %38 = math.tanh %37 : vector<8x640xf32>
    %c0_i32_22 = arith.constant 0 : i32
    %c0_i32_23 = arith.constant 0 : i32
    %c0_i32_24 = arith.constant 0 : i32
    %39 = tpu.memref_slice %arg9[%c0_i32_23, %c0_i32_24] : memref<128x640xf32, #tpu.memory_space<any>> -> memref<8x640xf32, #tpu.memory_space<any>>
    %40 = tpu.memref_slice %arg13[%c0_i32_22] : memref<1x!tpu.dma_semaphore, #tpu.memory_space<semaphore_mem>> -> memref<1x!tpu.dma_semaphore, #tpu.memory_space<semaphore_mem>>
    %41 = tpu.memref_squeeze %40 : memref<1x!tpu.dma_semaphore, #tpu.memory_space<semaphore_mem>> -> memref<!tpu.dma_semaphore, #tpu.memory_space<semaphore_mem>>
    tpu.wait_dma2 semaphore(%41 : memref<!tpu.dma_semaphore, #tpu.memory_space<semaphore_mem>>) src(%39 : memref<8x640xf32, #tpu.memory_space<any>>) dst(%arg12 : memref<8x640xf32, #tpu.memory_space<vmem>>)
    %c0_25 = arith.constant 0 : index
    %c0_26 = arith.constant 0 : index
    %42 = vector.load %arg12[%c0_25, %c0_26] : memref<8x640xf32, #tpu.memory_space<vmem>>, vector<8x640xf32>
    %43 = arith.mulf %38, %42 : vector<8x640xf32>
    %cst_27 = arith.constant dense<0.000000e+00> : vector<8xf32>
    %44 = vector.multi_reduction <add>, %43, %cst_27 [1] : vector<8x640xf32> to vector<8xf32>
    %45 = vector.shape_cast %44 : vector<8xf32> to vector<8x1xf32>
    %46 = arith.negf %45 : vector<8x1xf32>
    %47 = math.exp %46 : vector<8x1xf32>
    %cst_28 = arith.constant 1.000000e+00 : f32
    %48 = vector.broadcast %cst_28 : f32 to vector<8x1xf32>
    %49 = arith.addf %48, %47 : vector<8x1xf32>
    %50 = arith.divf %48, %49 : vector<8x1xf32>
    %c0_29 = arith.constant 0 : index
    %c0_30 = arith.constant 0 : index
    %51 = vector.load %arg11[%c0_29, %c0_30] : memref<8x1xf32, #tpu.memory_space<vmem>>, vector<8x1xf32>
    tpu.vector_store %arg11[%c0_29, %c0_30], %50 {strides = array<i32>} : memref<8x1xf32, #tpu.memory_space<vmem>>, vector<8x1xf32>,
    return
  }
  func.func @transform_0(%arg0: i32, %arg1: memref<32xi32, #tpu.memory_space<smem>>) -> (i32, i32) {
    %c0_i32 = arith.constant 0 : i32
    %c0_i32_0 = arith.constant 0 : i32
    return %arg0, %c0_i32 : i32, i32
  }
  func.func @transform_1(%arg0: i32, %arg1: memref<32xi32, #tpu.memory_space<smem>>) -> (i32, i32) {
    %c0_i32 = arith.constant 0 : i32
    %c0_i32_0 = arith.constant 0 : i32
    %c0_i32_1 = arith.constant 0 : i32
    return %c0_i32, %c0_i32_0 : i32, i32
  }
  func.func @transform_2(%arg0: i32, %arg1: memref<32xi32, #tpu.memory_space<smem>>) -> (i32, i32) {
    %c0_i32 = arith.constant 0 : i32
    %c0_i32_0 = arith.constant 0 : i32
    %c0_i32_1 = arith.constant 0 : i32
    return %c0_i32, %c0_i32_0 : i32, i32
  }
  func.func @transform_3(%arg0: i32, %arg1: memref<32xi32, #tpu.memory_space<smem>>) -> (i32, i32) {
    %c0_i32 = arith.constant 0 : i32
    %c0_i32_0 = arith.constant 0 : i32
    %c0_i32_1 = arith.constant 0 : i32
    return %c0_i32, %c0_i32_0 : i32, i32
  }
  func.func @transform_4(%arg0: i32, %arg1: memref<32xi32, #tpu.memory_space<smem>>) -> (i32, i32) {
    %c0_i32 = arith.constant 0 : i32
    %c0_i32_0 = arith.constant 0 : i32
    %c0_i32_1 = arith.constant 0 : i32
    return %c0_i32, %c0_i32_0 : i32, i32
  }
  func.func @transform_5(%arg0: i32, %arg1: memref<32xi32, #tpu.memory_space<smem>>) -> (i32, i32) {
    %c0_i32 = arith.constant 0 : i32
    %c0_i32_0 = arith.constant 0 : i32
    %c0_i32_1 = arith.constant 0 : i32
    return %c0_i32, %c0_i32_0 : i32, i32
  }
  func.func @transform_6(%arg0: i32, %arg1: memref<32xi32, #tpu.memory_space<smem>>) -> (i32, i32) {
    %c0_i32 = arith.constant 0 : i32
    %c0_i32_0 = arith.constant 0 : i32
    %c0_i32_1 = arith.constant 0 : i32
    return %c0_i32, %c0_i32_0 : i32, i32
  }
  func.func @transform_8(%arg0: i32, %arg1: memref<32xi32, #tpu.memory_space<smem>>) -> (i32, i32) {
    %c0_i32 = arith.constant 0 : i32
    %c0_i32_0 = arith.constant 0 : i32
    return %arg0, %c0_i32 : i32, i32
  }
  func.func @transform_9(%arg0: i32, %arg1: memref<32xi32, #tpu.memory_space<smem>>) -> (i32, i32) {
    %c0_i32 = arith.constant 0 : i32
    %c0_i32_0 = arith.constant 0 : i32
    return %arg0, %c0_i32 : i32, i32
  }
}

</mosaic_0001>

<llo_original>
// kernel: tpu_custom_call.1
$region0: #{tpu_custom_call.1}
  #allocation0 [shape = 'u32[]', space=smem, size = 0x4, offset = 0x4, fixed_abs, tag = 'smem constant byte address 0x4 - core index']
  #allocation1 [shape = 'u32[72,128]{1,0:T(1,128)}', space=vmem, size = 0x9000, scoped, tag = 'internal scratch']
  #allocation2 [shape = 'f32[8,640]{1,0:T(8,128)}', space=vmem, size = 0x5000, scoped, tag = 'scratch operand']
  #allocation3 [shape = 's32[1]{0}', space=sflag, size = 0x4, scoped, tag = 'scratch operand']
  #allocation4 [shape = 's32[1]{0}', space=sflag, size = 0x4, scoped, tag = 'scoped memory for tpu_custom_call.1']
  #allocation5 [shape = 'u8[512]{0}', space=smem, size = 0x200, scoped, tag = 'prefetched SMEM operand 0']
  #allocation17 [shape = 's32[]', space=sflag, size = 0x4, offset = 0, fixed_abs, tag = 'sflag constant byte address 0x0 - dummy sync flag']
  %s0 = inlined_call_operand.hbm [shape: s32[32], index: 0, kind: input, shape index: {}]
  %s1 = inlined_call_operand.hbm [shape: f32[32,128], index: 1, kind: input, shape index: {}]
  %s2 = inlined_call_operand.hbm [shape: bf16[128,640], index: 2, kind: input, shape index: {}]
  %s3 = inlined_call_operand.hbm [shape: f32[1,640], index: 3, kind: input, shape index: {}]
  %s4 = inlined_call_operand.hbm [shape: bf16[640,256], index: 4, kind: input, shape index: {}]
  %s5 = inlined_call_operand.hbm [shape: f32[1,256], index: 5, kind: input, shape index: {}]
  %s6 = inlined_call_operand.hbm [shape: bf16[128,640], index: 6, kind: input, shape index: {}]
  %s7 = inlined_call_operand.vmem [shape: f32[1,640], index: 7, kind: input, shape index: {}]
  %s8 = inlined_call_operand.hbm [shape: f32[128,640], index: 8, kind: input, shape index: {}]
  %s9 = inlined_call_operand.hbm [shape: f32[32,128], index: 9, kind: input, shape index: {}]
  %s10 = inlined_call_operand.vmem [shape: f32[32,1], index: 10, kind: output, shape index: {}]
  %s11 = sld [smem:[#allocation0]]
  $region100: #{tpu_custom_call.1} parent=0
    _
  %s13 = ssub.s32 1, %s11
  %s14 = scalar_select 0, %s13, %s11
  %s16 = sshll.u32 %s0, 4
  %s17 = int_to_ptr.hbm [resolvable:$true] %s16
  %19 = dma.hbm_to_smem %s17, 16, [#allocation5], [#allocation4]
  %21 = dma.done [#allocation4], 16
  %22 = sfence
  $region1: #{tpu_custom_call.1} parent=0
    #allocation6 [shape = 'u8[8192]{0}', space=vmem, size = 0x2000, scoped, tag = 'input window, operand 1']
    #allocation7 [shape = 's32[2]{0}', space=sflag, size = 0x8, scoped, tag = 'scoped memory for tpu_custom_call.1']
    #allocation8 [shape = 'u8[163840]{0}', space=vmem, size = 0x28000, scoped, tag = 'input window, operand 2, single buffered']
    #allocation9 [shape = 's32[1]{0}', space=sflag, size = 0x4, scoped, tag = 'scoped memory for tpu_custom_call.1']
    #allocation10 [shape = 'u8[2560]{0}', space=vmem, size = 0xc00, scoped, tag = 'input window, operand 3, single buffered']
    #allocation11 [shape = 'u8[327680]{0}', space=vmem, size = 0x50000, scoped, tag = 'input window, operand 4, single buffered']
    #allocation12 [shape = 's32[1]{0}', space=sflag, size = 0x4, scoped, tag = 'scoped memory for tpu_custom_call.1']
    #allocation13 [shape = 'u8[1024]{0}', space=vmem, size = 0x400, scoped, tag = 'input window, operand 5, single buffered']
    #allocation14 [shape = 'u8[163840]{0}', space=vmem, size = 0x28000, scoped, tag = 'input window, operand 6, single buffered']
    #allocation15 [shape = 's32[1]{0}', space=sflag, size = 0x4, scoped, tag = 'scoped memory for tpu_custom_call.1']
    #allocation16 [shape = 'u8[8192]{0}', space=vmem, size = 0x2000, scoped, tag = 'input window, operand 9']
    %23 = vsyncpa [#allocation7], 0
    %s24 = scalar_lea.sflag [#allocation7], 1
    %25 = vsyncpa %s24, 0
    %26 = vsyncpa [#allocation9], 0
    %27 = vsyncpa [#allocation12], 0
    %28 = vsyncpa [#allocation15], 0
    loop: start=0, step=1, limit=6
    $region2: #{tpu_custom_call.1} parent=1 // loop_pre_header
      _
    $region3: #{tpu_custom_call.1} parent=1 // loop_header
      %s30 = sphi 0, %s34
      %p31 = scmp.ge.s32.totalorder %s30, 6
      %s40 = sphi 0, %s42
      %s43 = sphi 0, %s40
      %s44 = sphi 0, %s43
      %s60 = sphi 0, %s44
      %s64 = sphi 0, %s64
      %s66 = sphi 0, %s64
      %s67 = sphi 0, %s66
      %s81 = sphi 0, %s67
      %s85 = sphi 0, %s85
      %s87 = sphi 0, %s85
      %s88 = sphi 0, %s87
      %s102 = sphi 0, %s88
      %s106 = sphi 0, %s106
      %s108 = sphi 0, %s106
      %s109 = sphi 0, %s108
      %s123 = sphi 0, %s109
      %s127 = sphi 0, %s127
      %s129 = sphi 0, %s127
      %s130 = sphi 0, %s129
      %s144 = sphi 0, %s130
      %s148 = sphi 0, %s148
      %s150 = sphi 0, %s148
      %s151 = sphi 0, %s150
      %s165 = sphi 0, %s151
      %s169 = sphi 0, %s169
      %s171 = sphi 0, %s169
      %s172 = sphi 0, %s171
      %s186 = sphi 0, %s172
      %s192 = sphi 0, %s194
      %s195 = sphi 0, %s192
      %s196 = sphi 0, %s195
      %s212 = sphi 0, %s196
      %s218 = sphi 0, %s220
      %s221 = sphi 0, %s218
      %s222 = sphi 0, %s221
      %s238 = sphi 0, %s222
    $region4: #{tpu_custom_call.1} parent=1 // loop_header_branch
      %33 = sbr.rel (%p31) target = $region8
    $region5: #{tpu_custom_call.1} parent=1 // loop_body
      %s35 = ssub.s32 %s30, 1
      %s36 = ssub.s32 %s30, 2
      %s37 = sadd.s32 %s30, 1
      %s38 = ssub.s32 %s30, %s37
      %p39 = scmp.eq.s32.totalorder %s38, 0
      %s41 = sadd.s32 %s40, 1
      %s42 = scalar_select %p39, %s40, %s41
      %p45 = pneg %p39
      %p46 = scmp.eq.s32.totalorder %s30, 3
      %p47 = por %p45, %p46
      %p48 = scmp.ne.s32.totalorder %s40, %s43
      %p49 = scmp.eq.s32.totalorder %s30, 0
      %p50 = por %p48, %p49
      %p51 = scmp.ne.s32.totalorder %s40, %s43
      %p52 = scmp.eq.s32.totalorder %s35, 3
      %p53 = por %p51, %p52
      %p54 = scmp.ne.s32.totalorder %s43, %s44
      %p55 = scmp.eq.s32.totalorder %s35, 0
      %p56 = por %p54, %p55
      %p57 = scmp.ne.s32.totalorder %s43, %s44
      %p58 = scmp.eq.s32.totalorder %s36, 3
      %p59 = por %p57, %p58
      %p61 = scmp.ne.s32.totalorder %s44, %s60
      %p62 = scmp.eq.s32.totalorder %s36, 0
      %p63 = por %p61, %p62
      %s65 = sadd.s32 %s64, 1
      %p68 = scmp.eq.s32.totalorder %s30, 3
      %p69 = scmp.ne.s32.totalorder %s64, %s66
      %p70 = scmp.eq.s32.totalorder %s30, 0
      %p71 = por %p69, %p70
      %p72 = scmp.ne.s32.totalorder %s64, %s66
      %p73 = scmp.eq.s32.totalorder %s35, 3
      %p74 = por %p72, %p73
      %p75 = scmp.ne.s32.totalorder %s66, %s67
      %p76 = scmp.eq.s32.totalorder %s35, 0
      %p77 = por %p75, %p76
      %p78 = scmp.ne.s32.totalorder %s66, %s67
      %p79 = scmp.eq.s32.totalorder %s36, 3
      %p80 = por %p78, %p79
      %p82 = scmp.ne.s32.totalorder %s67, %s81
      %p83 = scmp.eq.s32.totalorder %s36, 0
      %p84 = por %p82, %p83
      %s86 = sadd.s32 %s85, 1
      %p89 = scmp.eq.s32.totalorder %s30, 3
      %p90 = scmp.ne.s32.totalorder %s85, %s87
      %p91 = scmp.eq.s32.totalorder %s30, 0
      %p92 = por %p90, %p91
      %p93 = scmp.ne.s32.totalorder %s85, %s87
      %p94 = scmp.eq.s32.totalorder %s35, 3
      %p95 = por %p93, %p94
      %p96 = scmp.ne.s32.totalorder %s87, %s88
      %p97 = scmp.eq.s32.totalorder %s35, 0
      %p98 = por %p96, %p97
      %p99 = scmp.ne.s32.totalorder %s87, %s88
      %p100 = scmp.eq.s32.totalorder %s36, 3
      %p101 = por %p99, %p100
      %p103 = scmp.ne.s32.totalorder %s88, %s102
      %p104 = scmp.eq.s32.totalorder %s36, 0
      %p105 = por %p103, %p104
      %s107 = sadd.s32 %s106, 1
      %p110 = scmp.eq.s32.totalorder %s30, 3
      %p111 = scmp.ne.s32.totalorder %s106, %s108
      %p112 = scmp.eq.s32.totalorder %s30, 0
      %p113 = por %p111, %p112
      %p114 = scmp.ne.s32.totalorder %s106, %s108
      %p115 = scmp.eq.s32.totalorder %s35, 3
      %p116 = por %p114, %p115
      %p117 = scmp.ne.s32.totalorder %s108, %s109
      %p118 = scmp.eq.s32.totalorder %s35, 0
      %p119 = por %p117, %p118
      %p120 = scmp.ne.s32.totalorder %s108, %s109
      %p121 = scmp.eq.s32.totalorder %s36, 3
      %p122 = por %p120, %p121
      %p124 = scmp.ne.s32.totalorder %s109, %s123
      %p125 = scmp.eq.s32.totalorder %s36, 0
      %p126 = por %p124, %p125
      %s128 = sadd.s32 %s127, 1
      %p131 = scmp.eq.s32.totalorder %s30, 3
      %p132 = scmp.ne.s32.totalorder %s127, %s129
      %p133 = scmp.eq.s32.totalorder %s30, 0
      %p134 = por %p132, %p133
      %p135 = scmp.ne.s32.totalorder %s127, %s129
      %p136 = scmp.eq.s32.totalorder %s35, 3
      %p137 = por %p135, %p136
      %p138 = scmp.ne.s32.totalorder %s129, %s130
      %p139 = scmp.eq.s32.totalorder %s35, 0
      %p140 = por %p138, %p139
      %p141 = scmp.ne.s32.totalorder %s129, %s130
      %p142 = scmp.eq.s32.totalorder %s36, 3
      %p143 = por %p141, %p142
      %p145 = scmp.ne.s32.totalorder %s130, %s144
      %p146 = scmp.eq.s32.totalorder %s36, 0
      %p147 = por %p145, %p146
      %s149 = sadd.s32 %s148, 1
      %p152 = scmp.eq.s32.totalorder %s30, 3
      %p153 = scmp.ne.s32.totalorder %s148, %s150
      %p154 = scmp.eq.s32.totalorder %s30, 0
      %p155 = por %p153, %p154
      %p156 = scmp.ne.s32.totalorder %s148, %s150
      %p157 = scmp.eq.s32.totalorder %s35, 3
      %p158 = por %p156, %p157
      %p159 = scmp.ne.s32.totalorder %s150, %s151
      %p160 = scmp.eq.s32.totalorder %s35, 0
      %p161 = por %p159, %p160
      %p162 = scmp.ne.s32.totalorder %s150, %s151
      %p163 = scmp.eq.s32.totalorder %s36, 3
      %p164 = por %p162, %p163
      %p166 = scmp.ne.s32.totalorder %s151, %s165
      %p167 = scmp.eq.s32.totalorder %s36, 0
      %p168 = por %p166, %p167
      %s170 = sadd.s32 %s169, 1
      %p173 = scmp.eq.s32.totalorder %s30, 3
      %p174 = scmp.ne.s32.totalorder %s169, %s171
      %p175 = scmp.eq.s32.totalorder %s30, 0
      %p176 = por %p174, %p175
      %p177 = scmp.ne.s32.totalorder %s169, %s171
      %p178 = scmp.eq.s32.totalorder %s35, 3
      %p179 = por %p177, %p178
      %p180 = scmp.ne.s32.totalorder %s171, %s172
      %p181 = scmp.eq.s32.totalorder %s35, 0
      %p182 = por %p180, %p181
      %p183 = scmp.ne.s32.totalorder %s171, %s172
      %p184 = scmp.eq.s32.totalorder %s36, 3
      %p185 = por %p183, %p184
      %p187 = scmp.ne.s32.totalorder %s172, %s186
      %p188 = scmp.eq.s32.totalorder %s36, 0
      %p189 = por %p187, %p188
      %s190 = ssub.s32 %s30, %s37
      %p191 = scmp.eq.s32.totalorder %s190, 0
      %s193 = sadd.s32 %s192, 1
      %s194 = scalar_select %p191, %s192, %s193
      %p197 = pneg %p191
      %p198 = scmp.eq.s32.totalorder %s30, 3
      %p199 = por %p197, %p198
      %p200 = scmp.ne.s32.totalorder %s192, %s195
      %p201 = scmp.eq.s32.totalorder %s30, 0
      %p202 = por %p200, %p201
      %p203 = scmp.ne.s32.totalorder %s192, %s195
      %p204 = scmp.eq.s32.totalorder %s35, 3
      %p205 = por %p203, %p204
      %p206 = scmp.ne.s32.totalorder %s195, %s196
      %p207 = scmp.eq.s32.totalorder %s35, 0
      %p208 = por %p206, %p207
      %p209 = scmp.ne.s32.totalorder %s195, %s196
      %p210 = scmp.eq.s32.totalorder %s36, 3
      %p211 = por %p209, %p210
      %p213 = scmp.ne.s32.totalorder %s196, %s212
      %p214 = scmp.eq.s32.totalorder %s36, 0
      %p215 = por %p213, %p214
      %s216 = ssub.s32 %s30, %s37
      %p217 = scmp.eq.s32.totalorder %s216, 0
      %s219 = sadd.s32 %s218, 1
      %s220 = scalar_select %p217, %s218, %s219
      %p223 = pneg %p217
      %p224 = scmp.eq.s32.totalorder %s30, 3
      %p225 = por %p223, %p224
      %p226 = scmp.ne.s32.totalorder %s218, %s221
      %p227 = scmp.eq.s32.totalorder %s30, 0
      %p228 = por %p226, %p227
      %p229 = scmp.ne.s32.totalorder %s218, %s221
      %p230 = scmp.eq.s32.totalorder %s35, 3
      %p231 = por %p229, %p230
      %p232 = scmp.ne.s32.totalorder %s221, %s222
      %p233 = scmp.eq.s32.totalorder %s35, 0
      %p234 = por %p232, %p233
      %p235 = scmp.ne.s32.totalorder %s221, %s222
      %p236 = scmp.eq.s32.totalorder %s36, 3
      %p237 = por %p235, %p236
      %p239 = scmp.ne.s32.totalorder %s222, %s238
      %p240 = scmp.eq.s32.totalorder %s36, 0
      %p241 = por %p239, %p240
      %p242 = scmp.le.s32.totalorder 1, %s30
      %p243 = scmp.lt.s32.totalorder %s30, 5
      %p244 = pnand %p242, %p243
      %p245 = pneg %p244
      // Predicated region
      $region9: #{tpu_custom_call.1} parent=5 // pred_check
        _
      $region10: #{tpu_custom_call.1} parent=5 // pred_check_branch
        %247 = sbr.rel (%p244) target = $region12
      $region11: #{tpu_custom_call.1} parent=5 // pred_region
        %s248 = ssub.s32 %s30, 1
        // Predicated region
        $region13: #{tpu_custom_call.1} parent=11 // pred_check
          %p249 = pneg %p77
        $region14: #{tpu_custom_call.1} parent=11 // pred_check_branch
          %251 = sbr.rel (%p249) target = $region16
        $region15: #{tpu_custom_call.1} parent=11 // pred_region
          %253 = vsyncadd [#allocation9], 0
          %s254 = sshll.u32 %s2, 4
          %s255 = int_to_ptr.hbm [resolvable:$true] %s254
          %s256 = sshll.u32 [#allocation8], 4
          %s257 = int_to_ptr.vmem [resolvable:$true] %s256
          %262 = dma.hbm_to_vmem [thread:$0]  %s255, 5120, %s257, [#allocation9], 320, 320, 20
        $region16: #{tpu_custom_call.1} parent=11 // pred_fallthru
          _
        // Predicated region
        $region17: #{tpu_custom_call.1} parent=11 // pred_check
          %p263 = pneg %p98
        $region18: #{tpu_custom_call.1} parent=11 // pred_check_branch
          %265 = sbr.rel (%p263) target = $region20
        $region19: #{tpu_custom_call.1} parent=11 // pred_region
          %267 = vsyncadd [#allocation9], 0
          %s269 = sshll.u32 %s3, 4
          %s270 = int_to_ptr.hbm [resolvable:$true] %s269
          %s271 = sshll.u32 [#allocation10], 4
          %s272 = int_to_ptr.vmem [resolvable:$true] %s271
          %274 = dma.hbm_to_vmem [thread:$0]  %s270, 80, %s272, [#allocation9]
        $region20: #{tpu_custom_call.1} parent=11 // pred_fallthru
          _
        // Predicated region
        $region21: #{tpu_custom_call.1} parent=11 // pred_check
          %p275 = pneg %p119
        $region22: #{tpu_custom_call.1} parent=11 // pred_check_branch
          %277 = sbr.rel (%p275) target = $region24
        $region23: #{tpu_custom_call.1} parent=11 // pred_region
          %279 = vsyncadd [#allocation12], 0
          %s280 = sshll.u32 %s4, 4
          %s281 = int_to_ptr.hbm [resolvable:$true] %s280
          %s282 = sshll.u32 [#allocation11], 4
          %s283 = int_to_ptr.vmem [resolvable:$true] %s282
          %288 = dma.hbm_to_vmem [thread:$0]  %s281, 10240, %s283, [#allocation12], 128, 128, 8
        $region24: #{tpu_custom_call.1} parent=11 // pred_fallthru
          _
        // Predicated region
        $region25: #{tpu_custom_call.1} parent=11 // pred_check
          %p289 = pneg %p140
        $region26: #{tpu_custom_call.1} parent=11 // pred_check_branch
          %291 = sbr.rel (%p289) target = $region28
        $region27: #{tpu_custom_call.1} parent=11 // pred_region
          %293 = vsyncadd [#allocation12], 0
          %s295 = sshll.u32 %s5, 4
          %s296 = int_to_ptr.hbm [resolvable:$true] %s295
          %s297 = sshll.u32 [#allocation13], 4
          %s298 = int_to_ptr.vmem [resolvable:$true] %s297
          %300 = dma.hbm_to_vmem [thread:$0]  %s296, 32, %s298, [#allocation12]
        $region28: #{tpu_custom_call.1} parent=11 // pred_fallthru
          _
        // Predicated region
        $region29: #{tpu_custom_call.1} parent=11 // pred_check
          %p301 = pneg %p161
        $region30: #{tpu_custom_call.1} parent=11 // pred_check_branch
          %303 = sbr.rel (%p301) target = $region32
        $region31: #{tpu_custom_call.1} parent=11 // pred_region
          %305 = vsyncadd [#allocation15], 0
          %s306 = sshll.u32 %s6, 4
          %s307 = int_to_ptr.hbm [resolvable:$true] %s306
          %s308 = sshll.u32 [#allocation14], 4
          %s309 = int_to_ptr.vmem [resolvable:$true] %s308
          %314 = dma.hbm_to_vmem [thread:$0]  %s307, 5120, %s309, [#allocation15], 320, 320, 20
        $region32: #{tpu_custom_call.1} parent=11 // pred_fallthru
          _
        // Predicated region
        $region33: #{tpu_custom_call.1} parent=11 // pred_check
          %p315 = pneg %p182
        $region34: #{tpu_custom_call.1} parent=11 // pred_check_branch
          %317 = sbr.rel (%p315) target = $region36
        $region35: #{tpu_custom_call.1} parent=11 // pred_region
          _
        $region36: #{tpu_custom_call.1} parent=11 // pred_fallthru
          _
      $region12: #{tpu_custom_call.1} parent=5 // pred_fallthru
        _
      %p318 = scmp.lt.s32.totalorder %s30, 4
      // Predicated region
      $region37: #{tpu_custom_call.1} parent=5 // pred_check
        %p319 = pneg %p318
      $region38: #{tpu_custom_call.1} parent=5 // pred_check_branch
        %321 = sbr.rel (%p319) target = $region40
      $region39: #{tpu_custom_call.1} parent=5 // pred_region
        // Predicated region
        $region41: #{tpu_custom_call.1} parent=39 // pred_check
          %p322 = pneg %p50
        $region42: #{tpu_custom_call.1} parent=39 // pred_check_branch
          %324 = sbr.rel (%p322) target = $region44
        $region43: #{tpu_custom_call.1} parent=39 // pred_region
          %s325 = sand.u32 %s30, 1
          %s326 = scalar_lea.sflag [#allocation7], %s325
          %s327 = sand.u32 %s40, 1
          %s328 = smul.addr %s327, 8
          %s329 = scalar_lea.vmem [#allocation6], %s328
          %331 = vsyncadd %s326, 0
          %s332 = smul.addr %s30, 8
          %s333 = scalar_lea.hbm %s1, %s332
          %s335 = sshll.u32 %s333, 4
          %s336 = int_to_ptr.hbm [resolvable:$true] %s335
          %s337 = sshll.u32 %s329, 4
          %s338 = int_to_ptr.vmem [resolvable:$true] %s337
          %340 = dma.hbm_to_vmem [thread:$0]  %s336, 128, %s338, %s326
        $region44: #{tpu_custom_call.1} parent=39 // pred_fallthru
          _
        // Predicated region
        $region45: #{tpu_custom_call.1} parent=39 // pred_check
          %p341 = pneg %p202
        $region46: #{tpu_custom_call.1} parent=39 // pred_check_branch
          %343 = sbr.rel (%p341) target = $region48
        $region47: #{tpu_custom_call.1} parent=39 // pred_region
          %s344 = sand.u32 %s30, 1
          %s345 = scalar_lea.sflag [#allocation7], %s344
          %s346 = sand.u32 %s192, 1
          %s347 = smul.addr %s346, 8
          %s348 = scalar_lea.vmem [#allocation16], %s347
          %350 = vsyncadd %s345, 0
          %s351 = smul.addr %s30, 8
          %s352 = scalar_lea.hbm %s9, %s351
          %s354 = sshll.u32 %s352, 4
          %s355 = int_to_ptr.hbm [resolvable:$true] %s354
          %s356 = sshll.u32 %s348, 4
          %s357 = int_to_ptr.vmem [resolvable:$true] %s356
          %359 = dma.hbm_to_vmem [thread:$0]  %s355, 128, %s357, %s345
        $region48: #{tpu_custom_call.1} parent=39 // pred_fallthru
          _
      $region40: #{tpu_custom_call.1} parent=5 // pred_fallthru
        _
      %p360 = scmp.le.s32.totalorder 1, %s30
      %p361 = scmp.lt.s32.totalorder %s30, 5
      %p362 = pnand %p360, %p361
      %p363 = pneg %p362
      // Predicated region
      $region49: #{tpu_custom_call.1} parent=5 // pred_check
        _
      $region50: #{tpu_custom_call.1} parent=5 // pred_check_branch
        %365 = sbr.rel (%p362) target = $region52
      $region51: #{tpu_custom_call.1} parent=5 // pred_region
        %s366 = ssub.s32 %s30, 1
        %s367 = sand.u32 %s35, 1
        %s368 = scalar_lea.sflag [#allocation7], %s367
        %s369 = sand.u32 %s43, 1
        %s370 = smul.addr %s369, 8
        %s371 = scalar_lea.vmem [#allocation6], %s370
        // Predicated region
        $region53: #{tpu_custom_call.1} parent=51 // pred_check
          %p372 = pneg %p56
        $region54: #{tpu_custom_call.1} parent=51 // pred_check_branch
          %374 = sbr.rel (%p372) target = $region56
        $region55: #{tpu_custom_call.1} parent=51 // pred_region
          %376 = dma.done %s368, 128
        $region56: #{tpu_custom_call.1} parent=51 // pred_fallthru
          _
        // Predicated region
        $region57: #{tpu_custom_call.1} parent=51 // pred_check
          %p377 = pneg %p77
        $region58: #{tpu_custom_call.1} parent=51 // pred_check_branch
          %379 = sbr.rel (%p377) target = $region60
        $region59: #{tpu_custom_call.1} parent=51 // pred_region
          %381 = dma.done [#allocation9], 5120
        $region60: #{tpu_custom_call.1} parent=51 // pred_fallthru
          _
        // Predicated region
        $region61: #{tpu_custom_call.1} parent=51 // pred_check
          %p382 = pneg %p98
        $region62: #{tpu_custom_call.1} parent=51 // pred_check_branch
          %384 = sbr.rel (%p382) target = $region64
        $region63: #{tpu_custom_call.1} parent=51 // pred_region
          %386 = dma.done [#allocation9], 80
        $region64: #{tpu_custom_call.1} parent=51 // pred_fallthru
          _
        // Predicated region
        $region65: #{tpu_custom_call.1} parent=51 // pred_check
          %p387 = pneg %p119
        $region66: #{tpu_custom_call.1} parent=51 // pred_check_branch
          %389 = sbr.rel (%p387) target = $region68
        $region67: #{tpu_custom_call.1} parent=51 // pred_region
          %391 = dma.done [#allocation12], 10240
        $region68: #{tpu_custom_call.1} parent=51 // pred_fallthru
          _
        // Predicated region
        $region69: #{tpu_custom_call.1} parent=51 // pred_check
          %p392 = pneg %p140
        $region70: #{tpu_custom_call.1} parent=51 // pred_check_branch
          %394 = sbr.rel (%p392) target = $region72
        $region71: #{tpu_custom_call.1} parent=51 // pred_region
          %396 = dma.done [#allocation12], 32
        $region72: #{tpu_custom_call.1} parent=51 // pred_fallthru
          _
        // Predicated region
        $region73: #{tpu_custom_call.1} parent=51 // pred_check
          %p397 = pneg %p161
        $region74: #{tpu_custom_call.1} parent=51 // pred_check_branch
          %399 = sbr.rel (%p397) target = $region76
        $region75: #{tpu_custom_call.1} parent=51 // pred_region
          %401 = dma.done [#allocation15], 5120
        $region76: #{tpu_custom_call.1} parent=51 // pred_fallthru
          _
        %s402 = sand.u32 %s35, 1
        %s403 = scalar_lea.sflag [#allocation7], %s402
        %s404 = sand.u32 %s195, 1
        %s405 = smul.addr %s404, 8
        %s406 = scalar_lea.vmem [#allocation16], %s405
        // Predicated region
        $region77: #{tpu_custom_call.1} parent=51 // pred_check
          %p407 = pneg %p208
        $region78: #{tpu_custom_call.1} parent=51 // pred_check_branch
          %409 = sbr.rel (%p407) target = $region80
        $region79: #{tpu_custom_call.1} parent=51 // pred_region
          %411 = dma.done %s403, 128
        $region80: #{tpu_custom_call.1} parent=51 // pred_fallthru
          _
        %s412 = sand.u32 %s35, 1
        %s413 = scalar_lea.sflag [#allocation7], %s412
        %s414 = sand.u32 %s43, 1
        %s415 = smul.addr %s414, 8
        %s416 = scalar_lea.vmem [#allocation6], %s415
        %p417 = pneg %p56
        %p418 = pneg %p53
        %p419 = pneg %p77
        %p420 = pneg %p74
        %p421 = pneg %p98
        %p422 = pneg %p95
        %p423 = pneg %p119
        %p424 = pneg %p116
        %p425 = pneg %p140
        %p426 = pneg %p137
        %p427 = pneg %p161
        %p428 = pneg %p158
        %p429 = pneg %p182
        %p430 = pneg %p179
        %s431 = sand.u32 %s35, 1
        %s432 = scalar_lea.sflag [#allocation7], %s431
        %s433 = sand.u32 %s195, 1
        %s434 = smul.addr %s433, 8
        %s435 = scalar_lea.vmem [#allocation16], %s434
        %p436 = pneg %p208
        %p437 = pneg %p205
        %p438 = pneg %p234
        %p439 = pneg %p231
        %p440 = scmp.lt.s32.totalorder %s35, 3
        %s441 = scalar_select %p440, %s35, 3
        %s442 = smul.addr %s441, 8
        %s443 = scalar_lea.vmem %s10, %s442
        %p444 = scmp.lt.s32.totalorder %s35, 3
        %s445 = scalar_select %p444, %s35, 3
        %s446 = smul.addr %s445, 8
        %s447 = scalar_lea.vmem %s10, %s446
        %s448 = smul.u32 %s35, 8
        loop: start=0, step=1, limit=8
        $region81: #{tpu_custom_call.1} parent=51 // loop_pre_header
          _
        $region82: #{tpu_custom_call.1} parent=51 // loop_header
          %s450 = sphi 0, %s454
          %p451 = scmp.ge.s32.totalorder %s450, 8
        $region83: #{tpu_custom_call.1} parent=51 // loop_header_branch
          %453 = sbr.rel (%p451) target = $region87
        $region84: #{tpu_custom_call.1} parent=51 // loop_body
          %s455 = sadd.s32 %s448, %s450
          %s456 = sld [smem:[#allocation5 + %s455]]
          %s457 = sshrl.u32 %s456, 3
          %s458 = sand.u32 %s456, 7
          %s459 = smul.u32 %s457, 40
          %s460 = sadd.s32 %s458, %s459
          %s461 = scalar_lea.hbm %s8, %s460
          %s462 = sshrl.u32 %s450, 3
          %s463 = sand.u32 %s450, 7
          %s464 = smul.u32 %s462, 40
          %s465 = sadd.s32 %s463, %s464
          %s466 = scalar_lea.vmem [#allocation2], %s465
          %s467 = sshll.u32 %s461, 4
          %s468 = int_to_ptr.hbm [resolvable:$true] %s467
          %s469 = sshll.u32 %s466, 4
          %s470 = int_to_ptr.vmem [resolvable:$true] %s469
          %474 = dma.hbm_to_vmem [thread:$0]  %s468, 80, %s470, [#allocation3], 128, 128, 1
        $region85: #{tpu_custom_call.1} parent=51 // loop_footer
          %s454 = sadd.s32 1, %s450
        $region86: #{tpu_custom_call.1} parent=51 // loop_footer_branch
          %449 = sbr.rel target = $region82
        $region87: #{tpu_custom_call.1} parent=51 // loop_exit
          _
        %v475 = vld [vmem:[%s371] sm:$0xff]
        %v476 = vmul.f32 %v475, %v475
        %477 = vadd.xlane.f32.xlu0 %v476
        %v478 = vpop.xlane.xlu0 %477
        %v479 = vmax.f32 %v478, 1e-24
        %v480 = vrsqrt.pop %v479
        %v481 = vmul.f32 %v480, %v479
        %v482 = vmul.f32 %v481, %v480
        %v483 = vmul.f32 0.5, %v482
        %v484 = vsub.f32 1.5, %v483
        %v485 = vmul.f32 %v480, %v484
        %vm486 = vweird.f32 %v479
        %vm487 = vweird.f32 %v480
        %vm488 = vmor %vm486, %vm487
        %v489 = vsel %vm488, %v480, %v485
        %v490 = vmul.f32 %v475, %v489
        %v491 = vpack.c.bf16 %v490, %v490
        %v492 = vld [vmem:[#allocation8] sm:$0xff]
        %v493 = vld [vmem:[#allocation8 + $0x8] sm:$0xff]
        %v494 = vld [vmem:[#allocation8 + $0x10] sm:$0xf]
        %v495 = vld [vmem:[#allocation8 + $0x14] sm:$0xff]
        %v496 = vld [vmem:[#allocation8 + $0x1c] sm:$0xff]
        %v497 = vld [vmem:[#allocation8 + $0x24] sm:$0xf]
        %v498 = vld [vmem:[#allocation8 + $0x28] sm:$0xff]
        %v499 = vld [vmem:[#allocation8 + $0x30] sm:$0xff]
        %v500 = vld [vmem:[#allocation8 + $0x38] sm:$0xf]
        %v501 = vld [vmem:[#allocation8 + $0x3c] sm:$0xff]
        %v502 = vld [vmem:[#allocation8 + $0x44] sm:$0xff]
        %v503 = vld [vmem:[#allocation8 + $0x4c] sm:$0xf]
        %v504 = vld [vmem:[#allocation8 + $0x50] sm:$0xff]
        %v505 = vld [vmem:[#allocation8 + $0x58] sm:$0xff]
        %v506 = vld [vmem:[#allocation8 + $0x60] sm:$0xf]
        %v507 = vld [vmem:[#allocation8 + $0x64] sm:$0xff]
        %v508 = vld [vmem:[#allocation8 + $0x6c] sm:$0xff]
        %v509 = vld [vmem:[#allocation8 + $0x74] sm:$0xf]
        %v510 = vld [vmem:[#allocation8 + $0x78] sm:$0xff]
        %v511 = vld [vmem:[#allocation8 + $0x80] sm:$0xff]
        %v512 = vld [vmem:[#allocation8 + $0x88] sm:$0xf]
        %v513 = vld [vmem:[#allocation8 + $0x8c] sm:$0xff]
        %v514 = vld [vmem:[#allocation8 + $0x94] sm:$0xff]
        %v515 = vld [vmem:[#allocation8 + $0x9c] sm:$0xf]
        %v516 = vld [vmem:[#allocation8 + $0xa0] sm:$0xff]
        %v517 = vld [vmem:[#allocation8 + $0xa8] sm:$0xff]
        %v518 = vld [vmem:[#allocation8 + $0xb0] sm:$0xf]
        %v519 = vld [vmem:[#allocation8 + $0xb4] sm:$0xff]
        %v520 = vld [vmem:[#allocation8 + $0xbc] sm:$0xff]
        %v521 = vld [vmem:[#allocation8 + $0xc4] sm:$0xf]
        %v522 = vld [vmem:[#allocation8 + $0xc8] sm:$0xff]
        %v523 = vld [vmem:[#allocation8 + $0xd0] sm:$0xff]
        %v524 = vld [vmem:[#allocation8 + $0xd8] sm:$0xf]
        %v525 = vld [vmem:[#allocation8 + $0xdc] sm:$0xff]
        %v526 = vld [vmem:[#allocation8 + $0xe4] sm:$0xff]
        %v527 = vld [vmem:[#allocation8 + $0xec] sm:$0xf]
        %v528 = vld [vmem:[#allocation8 + $0xf0] sm:$0xff]
        %v529 = vld [vmem:[#allocation8 + $0xf8] sm:$0xff]
        %v530 = vld [vmem:[#allocation8 + $0x100] sm:$0xf]
        %v531 = vld [vmem:[#allocation8 + $0x104] sm:$0xff]
        %v532 = vld [vmem:[#allocation8 + $0x10c] sm:$0xff]
        %v533 = vld [vmem:[#allocation8 + $0x114] sm:$0xf]
        %v534 = vld [vmem:[#allocation8 + $0x118] sm:$0xff]
        %v535 = vld [vmem:[#allocation8 + $0x120] sm:$0xff]
        %v536 = vld [vmem:[#allocation8 + $0x128] sm:$0xf]
        %v537 = vld [vmem:[#allocation8 + $0x12c] sm:$0xff]
        %v538 = vld [vmem:[#allocation8 + $0x134] sm:$0xff]
        %v539 = vld [vmem:[#allocation8 + $0x13c] sm:$0xf]
        %v540 = vld [vmem:[#allocation10] sm:$0x1f]
        %v542 = vperm.slane %v540, 0
        %v543 = vperm.slane %v540, 1
        %v544 = vperm.slane %v540, 2
        %v545 = vperm.slane %v540, 3
        %v546 = vperm.slane %v540, 4
        %v600 = vunpack.c.l.b16 %v492
        %v601 = vunpack.c.h.b16 %v492
        %v602 = vunpack.c.l.b16 %v493
        %v603 = vunpack.c.h.b16 %v493
        %v604 = vunpack.c.l.b16 %v494
        %v605 = vunpack.c.l.b16 %v495
        %v606 = vunpack.c.h.b16 %v495
        %v607 = vunpack.c.l.b16 %v496
        %v608 = vunpack.c.h.b16 %v496
        %v609 = vunpack.c.l.b16 %v497
        %v610 = vunpack.c.l.b16 %v498
        %v611 = vunpack.c.h.b16 %v498
        %v612 = vunpack.c.l.b16 %v499
        %v613 = vunpack.c.h.b16 %v499
        %v614 = vunpack.c.l.b16 %v500
        %v615 = vunpack.c.l.b16 %v501
        %v616 = vunpack.c.h.b16 %v501
        %v617 = vunpack.c.l.b16 %v502
        %v618 = vunpack.c.h.b16 %v502
        %v619 = vunpack.c.l.b16 %v503
        %v620 = vunpack.c.l.b16 %v504
        %v621 = vunpack.c.h.b16 %v504
        %v622 = vunpack.c.l.b16 %v505
        %v623 = vunpack.c.h.b16 %v505
        %v624 = vunpack.c.l.b16 %v506
        %v625 = vunpack.c.l.b16 %v507
        %v626 = vunpack.c.h.b16 %v507
        %v627 = vunpack.c.l.b16 %v508
        %v628 = vunpack.c.h.b16 %v508
        %v629 = vunpack.c.l.b16 %v509
        %v630 = vunpack.c.l.b16 %v510
        %v631 = vunpack.c.h.b16 %v510
        %v632 = vunpack.c.l.b16 %v511
        %v633 = vunpack.c.h.b16 %v511
        %v634 = vunpack.c.l.b16 %v512
        %v635 = vunpack.c.l.b16 %v513
        %v636 = vunpack.c.h.b16 %v513
        %v637 = vunpack.c.l.b16 %v514
        %v638 = vunpack.c.h.b16 %v514
        %v639 = vunpack.c.l.b16 %v515
        %v640 = vunpack.c.l.b16 %v516
        %v641 = vunpack.c.h.b16 %v516
        %v642 = vunpack.c.l.b16 %v517
        %v643 = vunpack.c.h.b16 %v517
        %v644 = vunpack.c.l.b16 %v518
        %v645 = vunpack.c.l.b16 %v519
        %v646 = vunpack.c.h.b16 %v519
        %v647 = vunpack.c.l.b16 %v520
        %v648 = vunpack.c.h.b16 %v520
        %v649 = vunpack.c.l.b16 %v521
        %v650 = vunpack.c.l.b16 %v522
        %v651 = vunpack.c.h.b16 %v522
        %v652 = vunpack.c.l.b16 %v523
        %v653 = vunpack.c.h.b16 %v523
        %v654 = vunpack.c.l.b16 %v524
        %v655 = vunpack.c.l.b16 %v525
        %v656 = vunpack.c.h.b16 %v525
        %v657 = vunpack.c.l.b16 %v526
        %v658 = vunpack.c.h.b16 %v526
        %v659 = vunpack.c.l.b16 %v527
        %v660 = vunpack.c.l.b16 %v528
        %v661 = vunpack.c.h.b16 %v528
        %v662 = vunpack.c.l.b16 %v529
        %v663 = vunpack.c.h.b16 %v529
        %v664 = vunpack.c.l.b16 %v530
        %v665 = vunpack.c.l.b16 %v531
        %v666 = vunpack.c.h.b16 %v531
        %v667 = vunpack.c.l.b16 %v532
        %v668 = vunpack.c.h.b16 %v532
        %v669 = vunpack.c.l.b16 %v533
        %v670 = vunpack.c.l.b16 %v534
        %v671 = vunpack.c.h.b16 %v534
        %v672 = vunpack.c.l.b16 %v535
        %v673 = vunpack.c.h.b16 %v535
        %v674 = vunpack.c.l.b16 %v536
        %v675 = vunpack.c.l.b16 %v537
        %v676 = vunpack.c.h.b16 %v537
        %v677 = vunpack.c.l.b16 %v538
        %v678 = vunpack.c.h.b16 %v538
        %v679 = vunpack.c.l.b16 %v539
        %v680 = vpack.c.b16 %v605, %v600
        %v681 = vpack.c.b16 %v606, %v601
        %v682 = vpack.c.b16 %v607, %v602
        %v683 = vpack.c.b16 %v608, %v603
        %v684 = vpack.c.b16 %v609, %v604
        %v685 = vpack.c.b16 %v615, %v610
        %v686 = vpack.c.b16 %v616, %v611
        %v687 = vpack.c.b16 %v617, %v612
        %v688 = vpack.c.b16 %v618, %v613
        %v689 = vpack.c.b16 %v619, %v614
        %v690 = vpack.c.b16 %v625, %v620
        %v691 = vpack.c.b16 %v626, %v621
        %v692 = vpack.c.b16 %v627, %v622
        %v693 = vpack.c.b16 %v628, %v623
        %v694 = vpack.c.b16 %v629, %v624
        %v695 = vpack.c.b16 %v635, %v630
        %v696 = vpack.c.b16 %v636, %v631
        %v697 = vpack.c.b16 %v637, %v632
        %v698 = vpack.c.b16 %v638, %v633
        %v699 = vpack.c.b16 %v639, %v634
        %v700 = vpack.c.b16 %v645, %v640
        %v701 = vpack.c.b16 %v646, %v641
        %v702 = vpack.c.b16 %v647, %v642
        %v703 = vpack.c.b16 %v648, %v643
        %v704 = vpack.c.b16 %v649, %v644
        %v705 = vpack.c.b16 %v655, %v650
        %v706 = vpack.c.b16 %v656, %v651
        %v707 = vpack.c.b16 %v657, %v652
        %v708 = vpack.c.b16 %v658, %v653
        %v709 = vpack.c.b16 %v659, %v654
        %v710 = vpack.c.b16 %v665, %v660
        %v711 = vpack.c.b16 %v666, %v661
        %v712 = vpack.c.b16 %v667, %v662
        %v713 = vpack.c.b16 %v668, %v663
        %v714 = vpack.c.b16 %v669, %v664
        %v715 = vpack.c.b16 %v675, %v670
        %v716 = vpack.c.b16 %v676, %v671
        %v717 = vpack.c.b16 %v677, %v672
        %v718 = vpack.c.b16 %v678, %v673
        %v719 = vpack.c.b16 %v679, %v674
        %760 = vmatpush.bf16.msra.mxu0 %v715
        %761 = vmatpush.bf16.msra.mxu0 %v710
        %762 = vmatpush.bf16.msra.mxu0 %v705
        %763 = vmatpush.bf16.msra.mxu0 %v700
        %764 = vmatpush.bf16.msra.mxu0 %v695
        %765 = vmatpush.bf16.msra.mxu0 %v690
        %766 = vmatpush.bf16.msra.mxu0 %v685
        %767 = vmatpush.bf16.msra.mxu0 %v680
        %768 = vmatmul.bf16.gmra.mxu0 %v491
        %v769 = vpop.f32.mrf.mxu0
        %v770 = vadd.f32 %v542, %v769
        %v771 = vpop.f32.mrf.mxu0
        %772 = vdwg.mxu0
        %773 = vmatpush.bf16.msra.mxu0 %v716
        %774 = vmatpush.bf16.msra.mxu0 %v711
        %775 = vmatpush.bf16.msra.mxu0 %v706
        %776 = vmatpush.bf16.msra.mxu0 %v701
        %777 = vmatpush.bf16.msra.mxu0 %v696
        %778 = vmatpush.bf16.msra.mxu0 %v691
        %779 = vmatpush.bf16.msra.mxu0 %v686
        %780 = vmatpush.bf16.msra.mxu0 %v681
        %781 = vmatmul.bf16.gmra.mxu0 %v491
        %v782 = vpop.f32.mrf.mxu0
        %v783 = vadd.f32 %v543, %v782
        %v784 = vpop.f32.mrf.mxu0
        %785 = vdwg.mxu0
        %786 = vmatpush.bf16.msra.mxu0 %v717
        %787 = vmatpush.bf16.msra.mxu0 %v712
        %788 = vmatpush.bf16.msra.mxu0 %v707
        %789 = vmatpush.bf16.msra.mxu0 %v702
        %790 = vmatpush.bf16.msra.mxu0 %v697
        %791 = vmatpush.bf16.msra.mxu0 %v692
        %792 = vmatpush.bf16.msra.mxu0 %v687
        %793 = vmatpush.bf16.msra.mxu0 %v682
        %794 = vmatmul.bf16.gmra.mxu0 %v491
        %v795 = vpop.f32.mrf.mxu0
        %v796 = vadd.f32 %v544, %v795
        %v797 = vpop.f32.mrf.mxu0
        %798 = vdwg.mxu0
        %799 = vmatpush.bf16.msra.mxu0 %v718
        %800 = vmatpush.bf16.msra.mxu0 %v713
        %801 = vmatpush.bf16.msra.mxu0 %v708
        %802 = vmatpush.bf16.msra.mxu0 %v703
        %803 = vmatpush.bf16.msra.mxu0 %v698
        %804 = vmatpush.bf16.msra.mxu0 %v693
        %805 = vmatpush.bf16.msra.mxu0 %v688
        %806 = vmatpush.bf16.msra.mxu0 %v683
        %807 = vmatmul.bf16.gmra.mxu0 %v491
        %v808 = vpop.f32.mrf.mxu0
        %v809 = vadd.f32 %v545, %v808
        %v810 = vpop.f32.mrf.mxu0
        %811 = vdwg.mxu0
        %812 = vmatpush.bf16.msra.mxu0 %v719
        %813 = vmatpush.bf16.msra.mxu0 %v714
        %814 = vmatpush.bf16.msra.mxu0 %v709
        %815 = vmatpush.bf16.msra.mxu0 %v704
        %816 = vmatpush.bf16.msra.mxu0 %v699
        %817 = vmatpush.bf16.msra.mxu0 %v694
        %818 = vmatpush.bf16.msra.mxu0 %v689
        %819 = vmatpush.bf16.msra.mxu0 %v684
        %820 = vmatmul.bf16.gmra.mxu0 %v491
        %v821 = vpop.f32.mrf.mxu0
        %v822 = vadd.f32 %v546, %v821
        %v823 = vpop.f32.mrf.mxu0
        %824 = vdwg.mxu0
        %v825 = vtanh.pop %v770
        %v826 = vtanh.pop %v783
        %v827 = vtanh.pop %v796
        %v828 = vtanh.pop %v809
        %v829 = vtanh.pop %v822
        %v830 = vpack.c.bf16 %v825, %v825
        %v831 = vpack.c.bf16 %v826, %v826
        %v832 = vpack.c.bf16 %v827, %v827
        %v833 = vpack.c.bf16 %v828, %v828
        %v834 = vpack.c.bf16 %v829, %v829
        %v835 = vld [vmem:[#allocation11] sm:$0xff]
        %v836 = vld [vmem:[#allocation11 + $0x8] sm:$0xff]
        %v837 = vld [vmem:[#allocation11 + $0x10] sm:$0xff]
        %v838 = vld [vmem:[#allocation11 + $0x18] sm:$0xff]
        %v839 = vld [vmem:[#allocation11 + $0x20] sm:$0xff]
        %v840 = vld [vmem:[#allocation11 + $0x28] sm:$0xff]
        %v841 = vld [vmem:[#allocation11 + $0x30] sm:$0xff]
        %v842 = vld [vmem:[#allocation11 + $0x38] sm:$0xff]
        %v843 = vld [vmem:[#allocation11 + $0x40] sm:$0xff]
        %v844 = vld [vmem:[#allocation11 + $0x48] sm:$0xff]
        %v845 = vld [vmem:[#allocation11 + $0x50] sm:$0xff]
        %v846 = vld [vmem:[#allocation11 + $0x58] sm:$0xff]
        %v847 = vld [vmem:[#allocation11 + $0x60] sm:$0xff]
        %v848 = vld [vmem:[#allocation11 + $0x68] sm:$0xff]
        %v849 = vld [vmem:[#allocation11 + $0x70] sm:$0xff]
        %v850 = vld [vmem:[#allocation11 + $0x78] sm:$0xff]
        %v851 = vld [vmem:[#allocation11 + $0x80] sm:$0xff]
        %v852 = vld [vmem:[#allocation11 + $0x88] sm:$0xff]
        %v853 = vld [vmem:[#allocation11 + $0x90] sm:$0xff]
        %v854 = vld [vmem:[#allocation11 + $0x98] sm:$0xff]
        %v855 = vld [vmem:[#allocation11 + $0xa0] sm:$0xff]
        %v856 = vld [vmem:[#allocation11 + $0xa8] sm:$0xff]
        %v857 = vld [vmem:[#allocation11 + $0xb0] sm:$0xff]
        %v858 = vld [vmem:[#allocation11 + $0xb8] sm:$0xff]
        %v859 = vld [vmem:[#allocation11 + $0xc0] sm:$0xff]
        %v860 = vld [vmem:[#allocation11 + $0xc8] sm:$0xff]
        %v861 = vld [vmem:[#allocation11 + $0xd0] sm:$0xff]
        %v862 = vld [vmem:[#allocation11 + $0xd8] sm:$0xff]
        %v863 = vld [vmem:[#allocation11 + $0xe0] sm:$0xff]
        %v864 = vld [vmem:[#allocation11 + $0xe8] sm:$0xff]
        %v865 = vld [vmem:[#allocation11 + $0xf0] sm:$0xff]
        %v866 = vld [vmem:[#allocation11 + $0xf8] sm:$0xff]
        %v867 = vld [vmem:[#allocation11 + $0x100] sm:$0xff]
        %v868 = vld [vmem:[#allocation11 + $0x108] sm:$0xff]
        %v869 = vld [vmem:[#allocation11 + $0x110] sm:$0xff]
        %v870 = vld [vmem:[#allocation11 + $0x118] sm:$0xff]
        %v871 = vld [vmem:[#allocation11 + $0x120] sm:$0xff]
        %v872 = vld [vmem:[#allocation11 + $0x128] sm:$0xff]
        %v873 = vld [vmem:[#allocation11 + $0x130] sm:$0xff]
        %v874 = vld [vmem:[#allocation11 + $0x138] sm:$0xff]
        %v875 = vld [vmem:[#allocation11 + $0x140] sm:$0xff]
        %v876 = vld [vmem:[#allocation11 + $0x148] sm:$0xff]
        %v877 = vld [vmem:[#allocation11 + $0x150] sm:$0xff]
        %v878 = vld [vmem:[#allocation11 + $0x158] sm:$0xff]
        %v879 = vld [vmem:[#allocation11 + $0x160] sm:$0xff]
        %v880 = vld [vmem:[#allocation11 + $0x168] sm:$0xff]
        %v881 = vld [vmem:[#allocation11 + $0x170] sm:$0xff]
        %v882 = vld [vmem:[#allocation11 + $0x178] sm:$0xff]
        %v883 = vld [vmem:[#allocation11 + $0x180] sm:$0xff]
        %v884 = vld [vmem:[#allocation11 + $0x188] sm:$0xff]
        %v885 = vld [vmem:[#allocation11 + $0x190] sm:$0xff]
        %v886 = vld [vmem:[#allocation11 + $0x198] sm:$0xff]
        %v887 = vld [vmem:[#allocation11 + $0x1a0] sm:$0xff]
        %v888 = vld [vmem:[#allocation11 + $0x1a8] sm:$0xff]
        %v889 = vld [vmem:[#allocation11 + $0x1b0] sm:$0xff]
        %v890 = vld [vmem:[#allocation11 + $0x1b8] sm:$0xff]
        %v891 = vld [vmem:[#allocation11 + $0x1c0] sm:$0xff]
        %v892 = vld [vmem:[#allocation11 + $0x1c8] sm:$0xff]
        %v893 = vld [vmem:[#allocation11 + $0x1d0] sm:$0xff]
        %v894 = vld [vmem:[#allocation11 + $0x1d8] sm:$0xff]
        %v895 = vld [vmem:[#allocation11 + $0x1e0] sm:$0xff]
        %v896 = vld [vmem:[#allocation11 + $0x1e8] sm:$0xff]
        %v897 = vld [vmem:[#allocation11 + $0x1f0] sm:$0xff]
        %v898 = vld [vmem:[#allocation11 + $0x1f8] sm:$0xff]
        %v899 = vld [vmem:[#allocation11 + $0x200] sm:$0xff]
        %v900 = vld [vmem:[#allocation11 + $0x208] sm:$0xff]
        %v901 = vld [vmem:[#allocation11 + $0x210] sm:$0xff]
        %v902 = vld [vmem:[#allocation11 + $0x218] sm:$0xff]
        %v903 = vld [vmem:[#allocation11 + $0x220] sm:$0xff]
        %v904 = vld [vmem:[#allocation11 + $0x228] sm:$0xff]
        %v905 = vld [vmem:[#allocation11 + $0x230] sm:$0xff]
        %v906 = vld [vmem:[#allocation11 + $0x238] sm:$0xff]
        %v907 = vld [vmem:[#allocation11 + $0x240] sm:$0xff]
        %v908 = vld [vmem:[#allocation11 + $0x248] sm:$0xff]
        %v909 = vld [vmem:[#allocation11 + $0x250] sm:$0xff]
        %v910 = vld [vmem:[#allocation11 + $0x258] sm:$0xff]
        %v911 = vld [vmem:[#allocation11 + $0x260] sm:$0xff]
        %v912 = vld [vmem:[#allocation11 + $0x268] sm:$0xff]
        %v913 = vld [vmem:[#allocation11 + $0x270] sm:$0xff]
        %v914 = vld [vmem:[#allocation11 + $0x278] sm:$0xff]
        %v915 = vld [vmem:[#allocation13] sm:$0x3]
        %v917 = vperm.slane %v915, 0
        %v918 = vperm.slane %v915, 1
        %v1001 = vunpack.c.l.b16 %v835
        %v1002 = vunpack.c.h.b16 %v835
        %v1003 = vunpack.c.l.b16 %v836
        %v1004 = vunpack.c.h.b16 %v836
        %v1005 = vunpack.c.l.b16 %v837
        %v1006 = vunpack.c.h.b16 %v837
        %v1007 = vunpack.c.l.b16 %v838
        %v1008 = vunpack.c.h.b16 %v838
        %v1009 = vunpack.c.l.b16 %v839
        %v1010 = vunpack.c.h.b16 %v839
        %v1011 = vunpack.c.l.b16 %v840
        %v1012 = vunpack.c.h.b16 %v840
        %v1013 = vunpack.c.l.b16 %v841
        %v1014 = vunpack.c.h.b16 %v841
        %v1015 = vunpack.c.l.b16 %v842
        %v1016 = vunpack.c.h.b16 %v842
        %v1017 = vunpack.c.l.b16 %v843
        %v1018 = vunpack.c.h.b16 %v843
        %v1019 = vunpack.c.l.b16 %v844
        %v1020 = vunpack.c.h.b16 %v844
        %v1021 = vunpack.c.l.b16 %v845
        %v1022 = vunpack.c.h.b16 %v845
        %v1023 = vunpack.c.l.b16 %v846
        %v1024 = vunpack.c.h.b16 %v846
        %v1025 = vunpack.c.l.b16 %v847
        %v1026 = vunpack.c.h.b16 %v847
        %v1027 = vunpack.c.l.b16 %v848
        %v1028 = vunpack.c.h.b16 %v848
        %v1029 = vunpack.c.l.b16 %v849
        %v1030 = vunpack.c.h.b16 %v849
        %v1031 = vunpack.c.l.b16 %v850
        %v1032 = vunpack.c.h.b16 %v850
        %v1033 = vunpack.c.l.b16 %v851
        %v1034 = vunpack.c.h.b16 %v851
        %v1035 = vunpack.c.l.b16 %v852
        %v1036 = vunpack.c.h.b16 %v852
        %v1037 = vunpack.c.l.b16 %v853
        %v1038 = vunpack.c.h.b16 %v853
        %v1039 = vunpack.c.l.b16 %v854
        %v1040 = vunpack.c.h.b16 %v854
        %v1041 = vunpack.c.l.b16 %v855
        %v1042 = vunpack.c.h.b16 %v855
        %v1043 = vunpack.c.l.b16 %v856
        %v1044 = vunpack.c.h.b16 %v856
        %v1045 = vunpack.c.l.b16 %v857
        %v1046 = vunpack.c.h.b16 %v857
        %v1047 = vunpack.c.l.b16 %v858
        %v1048 = vunpack.c.h.b16 %v858
        %v1049 = vunpack.c.l.b16 %v859
        %v1050 = vunpack.c.h.b16 %v859
        %v1051 = vunpack.c.l.b16 %v860
        %v1052 = vunpack.c.h.b16 %v860
        %v1053 = vunpack.c.l.b16 %v861
        %v1054 = vunpack.c.h.b16 %v861
        %v1055 = vunpack.c.l.b16 %v862
        %v1056 = vunpack.c.h.b16 %v862
        %v1057 = vunpack.c.l.b16 %v863
        %v1058 = vunpack.c.h.b16 %v863
        %v1059 = vunpack.c.l.b16 %v864
        %v1060 = vunpack.c.h.b16 %v864
        %v1061 = vunpack.c.l.b16 %v865
        %v1062 = vunpack.c.h.b16 %v865
        %v1063 = vunpack.c.l.b16 %v866
        %v1064 = vunpack.c.h.b16 %v866
        %v1065 = vunpack.c.l.b16 %v867
        %v1066 = vunpack.c.h.b16 %v867
        %v1067 = vunpack.c.l.b16 %v868
        %v1068 = vunpack.c.h.b16 %v868
        %v1069 = vunpack.c.l.b16 %v869
        %v1070 = vunpack.c.h.b16 %v869
        %v1071 = vunpack.c.l.b16 %v870
        %v1072 = vunpack.c.h.b16 %v870
        %v1073 = vunpack.c.l.b16 %v871
        %v1074 = vunpack.c.h.b16 %v871
        %v1075 = vunpack.c.l.b16 %v872
        %v1076 = vunpack.c.h.b16 %v872
        %v1077 = vunpack.c.l.b16 %v873
        %v1078 = vunpack.c.h.b16 %v873
        %v1079 = vunpack.c.l.b16 %v874
        %v1080 = vunpack.c.h.b16 %v874
        %v1081 = vunpack.c.l.b16 %v875
        %v1082 = vunpack.c.h.b16 %v875
        %v1083 = vunpack.c.l.b16 %v876
        %v1084 = vunpack.c.h.b16 %v876
        %v1085 = vunpack.c.l.b16 %v877
        %v1086 = vunpack.c.h.b16 %v877
        %v1087 = vunpack.c.l.b16 %v878
        %v1088 = vunpack.c.h.b16 %v878
        %v1089 = vunpack.c.l.b16 %v879
        %v1090 = vunpack.c.h.b16 %v879
        %v1091 = vunpack.c.l.b16 %v880
        %v1092 = vunpack.c.h.b16 %v880
        %v1093 = vunpack.c.l.b16 %v881
        %v1094 = vunpack.c.h.b16 %v881
        %v1095 = vunpack.c.l.b16 %v882
        %v1096 = vunpack.c.h.b16 %v882
        %v1097 = vunpack.c.l.b16 %v883
        %v1098 = vunpack.c.h.b16 %v883
        %v1099 = vunpack.c.l.b16 %v884
        %v1100 = vunpack.c.h.b16 %v884
        %v1101 = vunpack.c.l.b16 %v885
        %v1102 = vunpack.c.h.b16 %v885
        %v1103 = vunpack.c.l.b16 %v886
        %v1104 = vunpack.c.h.b16 %v886
        %v1105 = vunpack.c.l.b16 %v887
        %v1106 = vunpack.c.h.b16 %v887
        %v1107 = vunpack.c.l.b16 %v888
        %v1108 = vunpack.c.h.b16 %v888
        %v1109 = vunpack.c.l.b16 %v889
        %v1110 = vunpack.c.h.b16 %v889
        %v1111 = vunpack.c.l.b16 %v890
        %v1112 = vunpack.c.h.b16 %v890
        %v1113 = vunpack.c.l.b16 %v891
        %v1114 = vunpack.c.h.b16 %v891
        %v1115 = vunpack.c.l.b16 %v892
        %v1116 = vunpack.c.h.b16 %v892
        %v1117 = vunpack.c.l.b16 %v893
        %v1118 = vunpack.c.h.b16 %v893
        %v1119 = vunpack.c.l.b16 %v894
        %v1120 = vunpack.c.h.b16 %v894
        %v1121 = vunpack.c.l.b16 %v895
        %v1122 = vunpack.c.h.b16 %v895
        %v1123 = vunpack.c.l.b16 %v896
        %v1124 = vunpack.c.h.b16 %v896
        %v1125 = vunpack.c.l.b16 %v897
        %v1126 = vunpack.c.h.b16 %v897
        %v1127 = vunpack.c.l.b16 %v898
        %v1128 = vunpack.c.h.b16 %v898
        %v1129 = vunpack.c.l.b16 %v899
        %v1130 = vunpack.c.h.b16 %v899
        %v1131 = vunpack.c.l.b16 %v900
        %v1132 = vunpack.c.h.b16 %v900
        %v1133 = vunpack.c.l.b16 %v901
        %v1134 = vunpack.c.h.b16 %v901
        %v1135 = vunpack.c.l.b16 %v902
        %v1136 = vunpack.c.h.b16 %v902
        %v1137 = vunpack.c.l.b16 %v903
        %v1138 = vunpack.c.h.b16 %v903
        %v1139 = vunpack.c.l.b16 %v904
        %v1140 = vunpack.c.h.b16 %v904
        %v1141 = vunpack.c.l.b16 %v905
        %v1142 = vunpack.c.h.b16 %v905
        %v1143 = vunpack.c.l.b16 %v906
        %v1144 = vunpack.c.h.b16 %v906
        %v1145 = vunpack.c.l.b16 %v907
        %v1146 = vunpack.c.h.b16 %v907
        %v1147 = vunpack.c.l.b16 %v908
        %v1148 = vunpack.c.h.b16 %v908
        %v1149 = vunpack.c.l.b16 %v909
        %v1150 = vunpack.c.h.b16 %v909
        %v1151 = vunpack.c.l.b16 %v910
        %v1152 = vunpack.c.h.b16 %v910
        %v1153 = vunpack.c.l.b16 %v911
        %v1154 = vunpack.c.h.b16 %v911
        %v1155 = vunpack.c.l.b16 %v912
        %v1156 = vunpack.c.h.b16 %v912
        %v1157 = vunpack.c.l.b16 %v913
        %v1158 = vunpack.c.h.b16 %v913
        %v1159 = vunpack.c.l.b16 %v914
        %v1160 = vunpack.c.h.b16 %v914
        %v1161 = vpack.c.b16 %v1003, %v1001
        %v1162 = vpack.c.b16 %v1004, %v1002
        %v1163 = vpack.c.b16 %v1007, %v1005
        %v1164 = vpack.c.b16 %v1008, %v1006
        %v1165 = vpack.c.b16 %v1011, %v1009
        %v1166 = vpack.c.b16 %v1012, %v1010
        %v1167 = vpack.c.b16 %v1015, %v1013
        %v1168 = vpack.c.b16 %v1016, %v1014
        %v1169 = vpack.c.b16 %v1019, %v1017
        %v1170 = vpack.c.b16 %v1020, %v1018
        %v1171 = vpack.c.b16 %v1023, %v1021
        %v1172 = vpack.c.b16 %v1024, %v1022
        %v1173 = vpack.c.b16 %v1027, %v1025
        %v1174 = vpack.c.b16 %v1028, %v1026
        %v1175 = vpack.c.b16 %v1031, %v1029
        %v1176 = vpack.c.b16 %v1032, %v1030
        %v1177 = vpack.c.b16 %v1035, %v1033
        %v1178 = vpack.c.b16 %v1036, %v1034
        %v1179 = vpack.c.b16 %v1039, %v1037
        %v1180 = vpack.c.b16 %v1040, %v1038
        %v1181 = vpack.c.b16 %v1043, %v1041
        %v1182 = vpack.c.b16 %v1044, %v1042
        %v1183 = vpack.c.b16 %v1047, %v1045
        %v1184 = vpack.c.b16 %v1048, %v1046
        %v1185 = vpack.c.b16 %v1051, %v1049
        %v1186 = vpack.c.b16 %v1052, %v1050
        %v1187 = vpack.c.b16 %v1055, %v1053
        %v1188 = vpack.c.b16 %v1056, %v1054
        %v1189 = vpack.c.b16 %v1059, %v1057
        %v1190 = vpack.c.b16 %v1060, %v1058
        %v1191 = vpack.c.b16 %v1063, %v1061
        %v1192 = vpack.c.b16 %v1064, %v1062
        %v1193 = vpack.c.b16 %v1067, %v1065
        %v1194 = vpack.c.b16 %v1068, %v1066
        %v1195 = vpack.c.b16 %v1071, %v1069
        %v1196 = vpack.c.b16 %v1072, %v1070
        %v1197 = vpack.c.b16 %v1075, %v1073
        %v1198 = vpack.c.b16 %v1076, %v1074
        %v1199 = vpack.c.b16 %v1079, %v1077
        %v1200 = vpack.c.b16 %v1080, %v1078
        %v1201 = vpack.c.b16 %v1083, %v1081
        %v1202 = vpack.c.b16 %v1084, %v1082
        %v1203 = vpack.c.b16 %v1087, %v1085
        %v1204 = vpack.c.b16 %v1088, %v1086
        %v1205 = vpack.c.b16 %v1091, %v1089
        %v1206 = vpack.c.b16 %v1092, %v1090
        %v1207 = vpack.c.b16 %v1095, %v1093
        %v1208 = vpack.c.b16 %v1096, %v1094
        %v1209 = vpack.c.b16 %v1099, %v1097
        %v1210 = vpack.c.b16 %v1100, %v1098
        %v1211 = vpack.c.b16 %v1103, %v1101
        %v1212 = vpack.c.b16 %v1104, %v1102
        %v1213 = vpack.c.b16 %v1107, %v1105
        %v1214 = vpack.c.b16 %v1108, %v1106
        %v1215 = vpack.c.b16 %v1111, %v1109
        %v1216 = vpack.c.b16 %v1112, %v1110
        %v1217 = vpack.c.b16 %v1115, %v1113
        %v1218 = vpack.c.b16 %v1116, %v1114
        %v1219 = vpack.c.b16 %v1119, %v1117
        %v1220 = vpack.c.b16 %v1120, %v1118
        %v1221 = vpack.c.b16 %v1123, %v1121
        %v1222 = vpack.c.b16 %v1124, %v1122
        %v1223 = vpack.c.b16 %v1127, %v1125
        %v1224 = vpack.c.b16 %v1128, %v1126
        %v1225 = vpack.c.b16 %v1131, %v1129
        %v1226 = vpack.c.b16 %v1132, %v1130
        %v1227 = vpack.c.b16 %v1135, %v1133
        %v1228 = vpack.c.b16 %v1136, %v1134
        %v1229 = vpack.c.b16 %v1139, %v1137
        %v1230 = vpack.c.b16 %v1140, %v1138
        %v1231 = vpack.c.b16 %v1143, %v1141
        %v1232 = vpack.c.b16 %v1144, %v1142
        %v1233 = vpack.c.b16 %v1147, %v1145
        %v1234 = vpack.c.b16 %v1148, %v1146
        %v1235 = vpack.c.b16 %v1151, %v1149
        %v1236 = vpack.c.b16 %v1152, %v1150
        %v1237 = vpack.c.b16 %v1155, %v1153
        %v1238 = vpack.c.b16 %v1156, %v1154
        %v1239 = vpack.c.b16 %v1159, %v1157
        %v1240 = vpack.c.b16 %v1160, %v1158
        %1321 = vmatpush.bf16.msra.mxu0 %v1175
        %1322 = vmatpush.bf16.msra.mxu0 %v1173
        %1323 = vmatpush.bf16.msra.mxu0 %v1171
        %1324 = vmatpush.bf16.msra.mxu0 %v1169
        %1325 = vmatpush.bf16.msra.mxu0 %v1167
        %1326 = vmatpush.bf16.msra.mxu0 %v1165
        %1327 = vmatpush.bf16.msra.mxu0 %v1163
        %1328 = vmatpush.bf16.msra.mxu0 %v1161
        %1329 = vmatmul.bf16.gmra.mxu0 %v830
        %v1330 = vpop.f32.mrf.mxu0
        %v1331 = vadd.f32 %v917, %v1330
        %v1332 = vpop.f32.mrf.mxu0
        %1333 = vdwg.mxu0
        %1334 = vmatpush.bf16.msra.mxu0 %v1191
        %1335 = vmatpush.bf16.msra.mxu0 %v1189
        %1336 = vmatpush.bf16.msra.mxu0 %v1187
        %1337 = vmatpush.bf16.msra.mxu0 %v1185
        %1338 = vmatpush.bf16.msra.mxu0 %v1183
        %1339 = vmatpush.bf16.msra.mxu0 %v1181
        %1340 = vmatpush.bf16.msra.mxu0 %v1179
        %1341 = vmatpush.bf16.msra.mxu0 %v1177
        %1342 = vmatmul.bf16.gmra.mxu0 %v831
        %v1343 = vpop.f32.mrf.mxu0
        %v1344 = vadd.f32 %v1331, %v1343
        %v1345 = vpop.f32.mrf.mxu0
        %1346 = vdwg.mxu0
        %1347 = vmatpush.bf16.msra.mxu0 %v1207
        %1348 = vmatpush.bf16.msra.mxu0 %v1205
        %1349 = vmatpush.bf16.msra.mxu0 %v1203
        %1350 = vmatpush.bf16.msra.mxu0 %v1201
        %1351 = vmatpush.bf16.msra.mxu0 %v1199
        %1352 = vmatpush.bf16.msra.mxu0 %v1197
        %1353 = vmatpush.bf16.msra.mxu0 %v1195
        %1354 = vmatpush.bf16.msra.mxu0 %v1193
        %1355 = vmatmul.bf16.gmra.mxu0 %v832
        %v1356 = vpop.f32.mrf.mxu0
        %v1357 = vadd.f32 %v1344, %v1356
        %v1358 = vpop.f32.mrf.mxu0
        %1359 = vdwg.mxu0
        %1360 = vmatpush.bf16.msra.mxu0 %v1223
        %1361 = vmatpush.bf16.msra.mxu0 %v1221
        %1362 = vmatpush.bf16.msra.mxu0 %v1219
        %1363 = vmatpush.bf16.msra.mxu0 %v1217
        %1364 = vmatpush.bf16.msra.mxu0 %v1215
        %1365 = vmatpush.bf16.msra.mxu0 %v1213
        %1366 = vmatpush.bf16.msra.mxu0 %v1211
        %1367 = vmatpush.bf16.msra.mxu0 %v1209
        %1368 = vmatmul.bf16.gmra.mxu0 %v833
        %v1369 = vpop.f32.mrf.mxu0
        %v1370 = vadd.f32 %v1357, %v1369
        %v1371 = vpop.f32.mrf.mxu0
        %1372 = vdwg.mxu0
        %1373 = vmatpush.bf16.msra.mxu0 %v1239
        %1374 = vmatpush.bf16.msra.mxu0 %v1237
        %1375 = vmatpush.bf16.msra.mxu0 %v1235
        %1376 = vmatpush.bf16.msra.mxu0 %v1233
        %1377 = vmatpush.bf16.msra.mxu0 %v1231
        %1378 = vmatpush.bf16.msra.mxu0 %v1229
        %1379 = vmatpush.bf16.msra.mxu0 %v1227
        %1380 = vmatpush.bf16.msra.mxu0 %v1225
        %1381 = vmatmul.bf16.gmra.mxu0 %v834
        %v1382 = vpop.f32.mrf.mxu0
        %v1383 = vadd.f32 %v1370, %v1382
        %v1384 = vpop.f32.mrf.mxu0
        %1385 = vdwg.mxu0
        %1386 = vmatpush.bf16.msra.mxu0 %v1176
        %1387 = vmatpush.bf16.msra.mxu0 %v1174
        %1388 = vmatpush.bf16.msra.mxu0 %v1172
        %1389 = vmatpush.bf16.msra.mxu0 %v1170
        %1390 = vmatpush.bf16.msra.mxu0 %v1168
        %1391 = vmatpush.bf16.msra.mxu0 %v1166
        %1392 = vmatpush.bf16.msra.mxu0 %v1164
        %1393 = vmatpush.bf16.msra.mxu0 %v1162
        %1394 = vmatmul.bf16.gmra.mxu0 %v830
        %v1395 = vpop.f32.mrf.mxu0
        %v1396 = vadd.f32 %v918, %v1395
        %v1397 = vpop.f32.mrf.mxu0
        %1398 = vdwg.mxu0
        %1399 = vmatpush.bf16.msra.mxu0 %v1192
        %1400 = vmatpush.bf16.msra.mxu0 %v1190
        %1401 = vmatpush.bf16.msra.mxu0 %v1188
        %1402 = vmatpush.bf16.msra.mxu0 %v1186
        %1403 = vmatpush.bf16.msra.mxu0 %v1184
        %1404 = vmatpush.bf16.msra.mxu0 %v1182
        %1405 = vmatpush.bf16.msra.mxu0 %v1180
        %1406 = vmatpush.bf16.msra.mxu0 %v1178
        %1407 = vmatmul.bf16.gmra.mxu0 %v831
        %v1408 = vpop.f32.mrf.mxu0
        %v1409 = vadd.f32 %v1396, %v1408
        %v1410 = vpop.f32.mrf.mxu0
        %1411 = vdwg.mxu0
        %1412 = vmatpush.bf16.msra.mxu0 %v1208
        %1413 = vmatpush.bf16.msra.mxu0 %v1206
        %1414 = vmatpush.bf16.msra.mxu0 %v1204
        %1415 = vmatpush.bf16.msra.mxu0 %v1202
        %1416 = vmatpush.bf16.msra.mxu0 %v1200
        %1417 = vmatpush.bf16.msra.mxu0 %v1198
        %1418 = vmatpush.bf16.msra.mxu0 %v1196
        %1419 = vmatpush.bf16.msra.mxu0 %v1194
        %1420 = vmatmul.bf16.gmra.mxu0 %v832
        %v1421 = vpop.f32.mrf.mxu0
        %v1422 = vadd.f32 %v1409, %v1421
        %v1423 = vpop.f32.mrf.mxu0
        %1424 = vdwg.mxu0
        %1425 = vmatpush.bf16.msra.mxu0 %v1224
        %1426 = vmatpush.bf16.msra.mxu0 %v1222
        %1427 = vmatpush.bf16.msra.mxu0 %v1220
        %1428 = vmatpush.bf16.msra.mxu0 %v1218
        %1429 = vmatpush.bf16.msra.mxu0 %v1216
        %1430 = vmatpush.bf16.msra.mxu0 %v1214
        %1431 = vmatpush.bf16.msra.mxu0 %v1212
        %1432 = vmatpush.bf16.msra.mxu0 %v1210
        %1433 = vmatmul.bf16.gmra.mxu0 %v833
        %v1434 = vpop.f32.mrf.mxu0
        %v1435 = vadd.f32 %v1422, %v1434
        %v1436 = vpop.f32.mrf.mxu0
        %1437 = vdwg.mxu0
        %1438 = vmatpush.bf16.msra.mxu0 %v1240
        %1439 = vmatpush.bf16.msra.mxu0 %v1238
        %1440 = vmatpush.bf16.msra.mxu0 %v1236
        %1441 = vmatpush.bf16.msra.mxu0 %v1234
        %1442 = vmatpush.bf16.msra.mxu0 %v1232
        %1443 = vmatpush.bf16.msra.mxu0 %v1230
        %1444 = vmatpush.bf16.msra.mxu0 %v1228
        %1445 = vmatpush.bf16.msra.mxu0 %v1226
        %1446 = vmatmul.bf16.gmra.mxu0 %v834
        %v1447 = vpop.f32.mrf.mxu0
        %v1448 = vadd.f32 %v1435, %v1447
        %v1449 = vpop.f32.mrf.mxu0
        %1450 = vdwg.mxu0
        %v1451 = vld [vmem:[%s406] sm:$0xff]
        %v1452 = vmul.f32 %v1448, 0.5
        %v1453 = vmul.f32 %v1452, 1.442695
        %v1454 = vpow.pop %v1453
        %v1455 = vmul.f32 %v1451, %v1454
        %v1456 = vadd.f32 %v1455, %v1383
        %v1457 = vpack.c.bf16 %v1456, %v1456
        %v1458 = vld [vmem:[#allocation14] sm:$0xff]
        %v1459 = vld [vmem:[#allocation14 + $0x8] sm:$0xff]
        %v1460 = vld [vmem:[#allocation14 + $0x10] sm:$0xf]
        %v1461 = vld [vmem:[#allocation14 + $0x14] sm:$0xff]
        %v1462 = vld [vmem:[#allocation14 + $0x1c] sm:$0xff]
        %v1463 = vld [vmem:[#allocation14 + $0x24] sm:$0xf]
        %v1464 = vld [vmem:[#allocation14 + $0x28] sm:$0xff]
        %v1465 = vld [vmem:[#allocation14 + $0x30] sm:$0xff]
        %v1466 = vld [vmem:[#allocation14 + $0x38] sm:$0xf]
        %v1467 = vld [vmem:[#allocation14 + $0x3c] sm:$0xff]
        %v1468 = vld [vmem:[#allocation14 + $0x44] sm:$0xff]
        %v1469 = vld [vmem:[#allocation14 + $0x4c] sm:$0xf]
        %v1470 = vld [vmem:[#allocation14 + $0x50] sm:$0xff]
        %v1471 = vld [vmem:[#allocation14 + $0x58] sm:$0xff]
        %v1472 = vld [vmem:[#allocation14 + $0x60] sm:$0xf]
        %v1473 = vld [vmem:[#allocation14 + $0x64] sm:$0xff]
        %v1474 = vld [vmem:[#allocation14 + $0x6c] sm:$0xff]
        %v1475 = vld [vmem:[#allocation14 + $0x74] sm:$0xf]
        %v1476 = vld [vmem:[#allocation14 + $0x78] sm:$0xff]
        %v1477 = vld [vmem:[#allocation14 + $0x80] sm:$0xff]
        %v1478 = vld [vmem:[#allocation14 + $0x88] sm:$0xf]
        %v1479 = vld [vmem:[#allocation14 + $0x8c] sm:$0xff]
        %v1480 = vld [vmem:[#allocation14 + $0x94] sm:$0xff]
        %v1481 = vld [vmem:[#allocation14 + $0x9c] sm:$0xf]
        %v1482 = vld [vmem:[#allocation14 + $0xa0] sm:$0xff]
        %v1483 = vld [vmem:[#allocation14 + $0xa8] sm:$0xff]
        %v1484 = vld [vmem:[#allocation14 + $0xb0] sm:$0xf]
        %v1485 = vld [vmem:[#allocation14 + $0xb4] sm:$0xff]
        %v1486 = vld [vmem:[#allocation14 + $0xbc] sm:$0xff]
        %v1487 = vld [vmem:[#allocation14 + $0xc4] sm:$0xf]
        %v1488 = vld [vmem:[#allocation14 + $0xc8] sm:$0xff]
        %v1489 = vld [vmem:[#allocation14 + $0xd0] sm:$0xff]
        %v1490 = vld [vmem:[#allocation14 + $0xd8] sm:$0xf]
        %v1491 = vld [vmem:[#allocation14 + $0xdc] sm:$0xff]
        %v1492 = vld [vmem:[#allocation14 + $0xe4] sm:$0xff]
        %v1493 = vld [vmem:[#allocation14 + $0xec] sm:$0xf]
        %v1494 = vld [vmem:[#allocation14 + $0xf0] sm:$0xff]
        %v1495 = vld [vmem:[#allocation14 + $0xf8] sm:$0xff]
        %v1496 = vld [vmem:[#allocation14 + $0x100] sm:$0xf]
        %v1497 = vld [vmem:[#allocation14 + $0x104] sm:$0xff]
        %v1498 = vld [vmem:[#allocation14 + $0x10c] sm:$0xff]
        %v1499 = vld [vmem:[#allocation14 + $0x114] sm:$0xf]
        %v1500 = vld [vmem:[#allocation14 + $0x118] sm:$0xff]
        %v1501 = vld [vmem:[#allocation14 + $0x120] sm:$0xff]
        %v1502 = vld [vmem:[#allocation14 + $0x128] sm:$0xf]
        %v1503 = vld [vmem:[#allocation14 + $0x12c] sm:$0xff]
        %v1504 = vld [vmem:[#allocation14 + $0x134] sm:$0xff]
        %v1505 = vld [vmem:[#allocation14 + $0x13c] sm:$0xf]
        %v1506 = vld [vmem:[%s7] sm:$0x1f]
        %v1508 = vperm.slane %v1506, 0
        %v1509 = vperm.slane %v1506, 1
        %v1510 = vperm.slane %v1506, 2
        %v1511 = vperm.slane %v1506, 3
        %v1512 = vperm.slane %v1506, 4
        %v1566 = vunpack.c.l.b16 %v1458
        %v1567 = vunpack.c.h.b16 %v1458
        %v1568 = vunpack.c.l.b16 %v1459
        %v1569 = vunpack.c.h.b16 %v1459
        %v1570 = vunpack.c.l.b16 %v1460
        %v1571 = vunpack.c.l.b16 %v1461
        %v1572 = vunpack.c.h.b16 %v1461
        %v1573 = vunpack.c.l.b16 %v1462
        %v1574 = vunpack.c.h.b16 %v1462
        %v1575 = vunpack.c.l.b16 %v1463
        %v1576 = vunpack.c.l.b16 %v1464
        %v1577 = vunpack.c.h.b16 %v1464
        %v1578 = vunpack.c.l.b16 %v1465
        %v1579 = vunpack.c.h.b16 %v1465
        %v1580 = vunpack.c.l.b16 %v1466
        %v1581 = vunpack.c.l.b16 %v1467
        %v1582 = vunpack.c.h.b16 %v1467
        %v1583 = vunpack.c.l.b16 %v1468
        %v1584 = vunpack.c.h.b16 %v1468
        %v1585 = vunpack.c.l.b16 %v1469
        %v1586 = vunpack.c.l.b16 %v1470
        %v1587 = vunpack.c.h.b16 %v1470
        %v1588 = vunpack.c.l.b16 %v1471
        %v1589 = vunpack.c.h.b16 %v1471
        %v1590 = vunpack.c.l.b16 %v1472
        %v1591 = vunpack.c.l.b16 %v1473
        %v1592 = vunpack.c.h.b16 %v1473
        %v1593 = vunpack.c.l.b16 %v1474
        %v1594 = vunpack.c.h.b16 %v1474
        %v1595 = vunpack.c.l.b16 %v1475
        %v1596 = vunpack.c.l.b16 %v1476
        %v1597 = vunpack.c.h.b16 %v1476
        %v1598 = vunpack.c.l.b16 %v1477
        %v1599 = vunpack.c.h.b16 %v1477
        %v1600 = vunpack.c.l.b16 %v1478
        %v1601 = vunpack.c.l.b16 %v1479
        %v1602 = vunpack.c.h.b16 %v1479
        %v1603 = vunpack.c.l.b16 %v1480
        %v1604 = vunpack.c.h.b16 %v1480
        %v1605 = vunpack.c.l.b16 %v1481
        %v1606 = vunpack.c.l.b16 %v1482
        %v1607 = vunpack.c.h.b16 %v1482
        %v1608 = vunpack.c.l.b16 %v1483
        %v1609 = vunpack.c.h.b16 %v1483
        %v1610 = vunpack.c.l.b16 %v1484
        %v1611 = vunpack.c.l.b16 %v1485
        %v1612 = vunpack.c.h.b16 %v1485
        %v1613 = vunpack.c.l.b16 %v1486
        %v1614 = vunpack.c.h.b16 %v1486
        %v1615 = vunpack.c.l.b16 %v1487
        %v1616 = vunpack.c.l.b16 %v1488
        %v1617 = vunpack.c.h.b16 %v1488
        %v1618 = vunpack.c.l.b16 %v1489
        %v1619 = vunpack.c.h.b16 %v1489
        %v1620 = vunpack.c.l.b16 %v1490
        %v1621 = vunpack.c.l.b16 %v1491
        %v1622 = vunpack.c.h.b16 %v1491
        %v1623 = vunpack.c.l.b16 %v1492
        %v1624 = vunpack.c.h.b16 %v1492
        %v1625 = vunpack.c.l.b16 %v1493
        %v1626 = vunpack.c.l.b16 %v1494
        %v1627 = vunpack.c.h.b16 %v1494
        %v1628 = vunpack.c.l.b16 %v1495
        %v1629 = vunpack.c.h.b16 %v1495
        %v1630 = vunpack.c.l.b16 %v1496
        %v1631 = vunpack.c.l.b16 %v1497
        %v1632 = vunpack.c.h.b16 %v1497
        %v1633 = vunpack.c.l.b16 %v1498
        %v1634 = vunpack.c.h.b16 %v1498
        %v1635 = vunpack.c.l.b16 %v1499
        %v1636 = vunpack.c.l.b16 %v1500
        %v1637 = vunpack.c.h.b16 %v1500
        %v1638 = vunpack.c.l.b16 %v1501
        %v1639 = vunpack.c.h.b16 %v1501
        %v1640 = vunpack.c.l.b16 %v1502
        %v1641 = vunpack.c.l.b16 %v1503
        %v1642 = vunpack.c.h.b16 %v1503
        %v1643 = vunpack.c.l.b16 %v1504
        %v1644 = vunpack.c.h.b16 %v1504
        %v1645 = vunpack.c.l.b16 %v1505
        %v1646 = vpack.c.b16 %v1571, %v1566
        %v1647 = vpack.c.b16 %v1572, %v1567
        %v1648 = vpack.c.b16 %v1573, %v1568
        %v1649 = vpack.c.b16 %v1574, %v1569
        %v1650 = vpack.c.b16 %v1575, %v1570
        %v1651 = vpack.c.b16 %v1581, %v1576
        %v1652 = vpack.c.b16 %v1582, %v1577
        %v1653 = vpack.c.b16 %v1583, %v1578
        %v1654 = vpack.c.b16 %v1584, %v1579
        %v1655 = vpack.c.b16 %v1585, %v1580
        %v1656 = vpack.c.b16 %v1591, %v1586
        %v1657 = vpack.c.b16 %v1592, %v1587
        %v1658 = vpack.c.b16 %v1593, %v1588
        %v1659 = vpack.c.b16 %v1594, %v1589
        %v1660 = vpack.c.b16 %v1595, %v1590
        %v1661 = vpack.c.b16 %v1601, %v1596
        %v1662 = vpack.c.b16 %v1602, %v1597
        %v1663 = vpack.c.b16 %v1603, %v1598
        %v1664 = vpack.c.b16 %v1604, %v1599
        %v1665 = vpack.c.b16 %v1605, %v1600
        %v1666 = vpack.c.b16 %v1611, %v1606
        %v1667 = vpack.c.b16 %v1612, %v1607
        %v1668 = vpack.c.b16 %v1613, %v1608
        %v1669 = vpack.c.b16 %v1614, %v1609
        %v1670 = vpack.c.b16 %v1615, %v1610
        %v1671 = vpack.c.b16 %v1621, %v1616
        %v1672 = vpack.c.b16 %v1622, %v1617
        %v1673 = vpack.c.b16 %v1623, %v1618
        %v1674 = vpack.c.b16 %v1624, %v1619
        %v1675 = vpack.c.b16 %v1625, %v1620
        %v1676 = vpack.c.b16 %v1631, %v1626
        %v1677 = vpack.c.b16 %v1632, %v1627
        %v1678 = vpack.c.b16 %v1633, %v1628
        %v1679 = vpack.c.b16 %v1634, %v1629
        %v1680 = vpack.c.b16 %v1635, %v1630
        %v1681 = vpack.c.b16 %v1641, %v1636
        %v1682 = vpack.c.b16 %v1642, %v1637
        %v1683 = vpack.c.b16 %v1643, %v1638
        %v1684 = vpack.c.b16 %v1644, %v1639
        %v1685 = vpack.c.b16 %v1645, %v1640
        %1726 = vmatpush.bf16.msra.mxu0 %v1681
        %1727 = vmatpush.bf16.msra.mxu0 %v1676
        %1728 = vmatpush.bf16.msra.mxu0 %v1671
        %1729 = vmatpush.bf16.msra.mxu0 %v1666
        %1730 = vmatpush.bf16.msra.mxu0 %v1661
        %1731 = vmatpush.bf16.msra.mxu0 %v1656
        %1732 = vmatpush.bf16.msra.mxu0 %v1651
        %1733 = vmatpush.bf16.msra.mxu0 %v1646
        %1734 = vmatmul.bf16.gmra.mxu0 %v1457
        %v1735 = vpop.f32.mrf.mxu0
        %v1736 = vadd.f32 %v1508, %v1735
        %v1737 = vpop.f32.mrf.mxu0
        %1738 = vdwg.mxu0
        %1739 = vmatpush.bf16.msra.mxu0 %v1682
        %1740 = vmatpush.bf16.msra.mxu0 %v1677
        %1741 = vmatpush.bf16.msra.mxu0 %v1672
        %1742 = vmatpush.bf16.msra.mxu0 %v1667
        %1743 = vmatpush.bf16.msra.mxu0 %v1662
        %1744 = vmatpush.bf16.msra.mxu0 %v1657
        %1745 = vmatpush.bf16.msra.mxu0 %v1652
        %1746 = vmatpush.bf16.msra.mxu0 %v1647
        %1747 = vmatmul.bf16.gmra.mxu0 %v1457
        %v1748 = vpop.f32.mrf.mxu0
        %v1749 = vadd.f32 %v1509, %v1748
        %v1750 = vpop.f32.mrf.mxu0
        %1751 = vdwg.mxu0
        %1752 = vmatpush.bf16.msra.mxu0 %v1683
        %1753 = vmatpush.bf16.msra.mxu0 %v1678
        %1754 = vmatpush.bf16.msra.mxu0 %v1673
        %1755 = vmatpush.bf16.msra.mxu0 %v1668
        %1756 = vmatpush.bf16.msra.mxu0 %v1663
        %1757 = vmatpush.bf16.msra.mxu0 %v1658
        %1758 = vmatpush.bf16.msra.mxu0 %v1653
        %1759 = vmatpush.bf16.msra.mxu0 %v1648
        %1760 = vmatmul.bf16.gmra.mxu0 %v1457
        %v1761 = vpop.f32.mrf.mxu0
        %v1762 = vadd.f32 %v1510, %v1761
        %v1763 = vpop.f32.mrf.mxu0
        %1764 = vdwg.mxu0
        %1765 = vmatpush.bf16.msra.mxu0 %v1684
        %1766 = vmatpush.bf16.msra.mxu0 %v1679
        %1767 = vmatpush.bf16.msra.mxu0 %v1674
        %1768 = vmatpush.bf16.msra.mxu0 %v1669
        %1769 = vmatpush.bf16.msra.mxu0 %v1664
        %1770 = vmatpush.bf16.msra.mxu0 %v1659
        %1771 = vmatpush.bf16.msra.mxu0 %v1654
        %1772 = vmatpush.bf16.msra.mxu0 %v1649
        %1773 = vmatmul.bf16.gmra.mxu0 %v1457
        %v1774 = vpop.f32.mrf.mxu0
        %v1775 = vadd.f32 %v1511, %v1774
        %v1776 = vpop.f32.mrf.mxu0
        %1777 = vdwg.mxu0
        %1778 = vmatpush.bf16.msra.mxu0 %v1685
        %1779 = vmatpush.bf16.msra.mxu0 %v1680
        %1780 = vmatpush.bf16.msra.mxu0 %v1675
        %1781 = vmatpush.bf16.msra.mxu0 %v1670
        %1782 = vmatpush.bf16.msra.mxu0 %v1665
        %1783 = vmatpush.bf16.msra.mxu0 %v1660
        %1784 = vmatpush.bf16.msra.mxu0 %v1655
        %1785 = vmatpush.bf16.msra.mxu0 %v1650
        %1786 = vmatmul.bf16.gmra.mxu0 %v1457
        %v1787 = vpop.f32.mrf.mxu0
        %v1788 = vadd.f32 %v1512, %v1787
        %v1789 = vpop.f32.mrf.mxu0
        %1790 = vdwg.mxu0
        %v1791 = vtanh.pop %v1736
        %v1792 = vtanh.pop %v1749
        %v1793 = vtanh.pop %v1762
        %v1794 = vtanh.pop %v1775
        %v1795 = vtanh.pop %v1788
        %s1796 = smul.u32 8, 1
        %s1797 = smul.u32 %s1796, 5
        %s1798 = sshll.u32 %s1797, 4
        %1799 = dma.done [#allocation3], %s1798
        %v1800 = vld [vmem:[#allocation2] sm:$0xff]
        %v1801 = vld [vmem:[#allocation2 + $0x8] sm:$0xff]
        %v1802 = vld [vmem:[#allocation2 + $0x10] sm:$0xff]
        %v1803 = vld [vmem:[#allocation2 + $0x18] sm:$0xff]
        %v1804 = vld [vmem:[#allocation2 + $0x20] sm:$0xff]
        %v1805 = vmul.f32 %v1791, %v1800
        %v1806 = vmul.f32 %v1792, %v1801
        %v1807 = vmul.f32 %v1793, %v1802
        %v1808 = vmul.f32 %v1794, %v1803
        %v1809 = vmul.f32 %v1795, %v1804
        %v1810 = vadd.f32 %v1805, %v1806
        %v1811 = vadd.f32 %v1810, %v1807
        %v1812 = vadd.f32 %v1811, %v1808
        %v1813 = vadd.f32 %v1812, %v1809
        %1814 = vadd.xlane.f32.xlu0 %v1813
        %v1815 = vpop.xlane.xlu0 %1814
        %v1816 = vxor.u32 %v1815, 2147483648
        %v1817 = vmul.f32 %v1816, 1.442695
        %v1818 = vpow.pop %v1817
        %v1819 = vadd.f32 %v1818, 1.0
        %v1820 = vrcp.pop %v1819
        %v1821 = vmul.f32 %v1819, %v1820
        %v1822 = vsub.f32 1.0, %v1821
        %v1823 = vmul.f32 %v1820, %v1822
        %v1824 = vadd.f32 %v1820, %v1823
        %vm1825 = vweird.f32 %v1819
        %vm1826 = vweird.f32 %v1820
        %vm1827 = vmor %vm1825, %vm1826
        %v1828 = vsel %vm1827, %v1820, %v1824
        %v1829 = vand.u32 2147483647, %v1819
        %vm1830 = vcmp.eq.f32.partialorder %v1829, 8.507059e+37
        %v1831 = vand.u32 %v1819, 2147483648
        %v1832 = vor.u32 1.1754944e-38, %v1831
        %v1833 = vsel %vm1830, %v1832, %v1828
        %v1834 = vmul.f32 1.0, %v1833
        %vm1835 = vcmask 7168
        %1836 = vst.msk [vmem:[%s447] sm:$0xff] %vm1835, %v1834
        %p1837 = scmp.lt.s32.totalorder %s35, 3
        %s1838 = scalar_select %p1837, %s35, 3
        %s1839 = smul.addr %s1838, 8
        %s1840 = scalar_lea.vmem %s10, %s1839
        // Predicated region
        $region88: #{tpu_custom_call.1} parent=51 // pred_check
          %p1841 = pneg %p231
        $region89: #{tpu_custom_call.1} parent=51 // pred_check_branch
          %1843 = sbr.rel (%p1841) target = $region91
        $region90: #{tpu_custom_call.1} parent=51 // pred_region
          _
        $region91: #{tpu_custom_call.1} parent=51 // pred_fallthru
          _
      $region52: #{tpu_custom_call.1} parent=5 // pred_fallthru
        _
      %p1844 = scmp.le.s32.totalorder 2, %s30
      // Predicated region
      $region92: #{tpu_custom_call.1} parent=5 // pred_check
        %p1845 = pneg %p1844
      $region93: #{tpu_custom_call.1} parent=5 // pred_check_branch
        %1847 = sbr.rel (%p1845) target = $region95
      $region94: #{tpu_custom_call.1} parent=5 // pred_region
        %s1848 = ssub.s32 %s30, 2
        // Predicated region
        $region96: #{tpu_custom_call.1} parent=94 // pred_check
          %p1849 = pneg %p237
        $region97: #{tpu_custom_call.1} parent=94 // pred_check_branch
          %1851 = sbr.rel (%p1849) target = $region99
        $region98: #{tpu_custom_call.1} parent=94 // pred_region
          %p1852 = scmp.lt.s32.totalorder %s36, 3
          %s1853 = scalar_select %p1852, %s36, 3
          %s1854 = smul.addr %s1853, 8
          %s1855 = scalar_lea.vmem %s10, %s1854
        $region99: #{tpu_custom_call.1} parent=94 // pred_fallthru
          _
      $region95: #{tpu_custom_call.1} parent=5 // pred_fallthru
        _
    $region6: #{tpu_custom_call.1} parent=1 // loop_footer
      %s34 = sadd.s32 1, %s30
    $region7: #{tpu_custom_call.1} parent=1 // loop_footer_branch
      %29 = sbr.rel target = $region3
    $region8: #{tpu_custom_call.1} parent=1 // loop_exit
      _
    %1856 = vsyncpa [#allocation7], 1
    %s1857 = scalar_lea.sflag [#allocation7], 1
    %1858 = vsyncpa %s1857, 1
    %1859 = vsyncpa [#allocation9], 1
    %1860 = vsyncpa [#allocation12], 1
    %1861 = vsyncpa [#allocation15], 1
  %1862 = vsyncmov [#allocation3]
  %s1863 = vpop.sfrf %1862
  %p1864 = scmp.eq.s32.totalorder %s1863, 0
  %p1865 = pneg %p1864
  %1867 = shalt.err (%p1865)

</llo_original>
